<compile_context>
chip_gen: v6e
topology: v6e:2x2x1
jax: 0.10.0
libtpu: 0.0.40
codegen_flags: <defaults>
</compile_context>

<pallas_src>
import functools

import numpy as np
import jax
import jax.numpy as jnp
from jax import lax
from jax.experimental import pallas as pl
from jax.experimental.pallas import tpu as pltpu

LEAKY_SLOPE = 0.2
BN_EPS = 1e-5


def _bn_act(x, inv_m):
    """Training-mode BatchNorm (gamma=1, beta=0, biased batch var, two-pass) + LeakyReLU(0.2).

    x: (c, M) channel-major float32; per-channel stats over the M (lane) axis.
    """
    mean = jnp.sum(x, axis=1, keepdims=True) * inv_m
    d = x - mean
    var = jnp.sum(d * d, axis=1, keepdims=True) * inv_m
    y = d * lax.rsqrt(var + BN_EPS)
    return jnp.where(y >= 0, y, LEAKY_SLOPE * y)


def _lane_shift(x, off, M):
    """result[:, m] = x[:, (m + off) % M] (explicit slices+concat; wrapped lanes get masked)."""
    s = off % M
    if s == 0:
        return x
    return jnp.concatenate([x[:, s:], x[:, :s]], axis=1)


def _dense_block_kernel(x_ref, m_ref, *refs, H, W, Cin, A, G, depth, KH, KW, pad):
    """Fused DenseBlock2d forward, channel-major (C, M) layout with M = N*H*W.

    x_ref        : (Cin, M) f32            raw input, channel-major
    m_ref        : (KH*KW, M) f32          per-tap border masks (conv zero padding)
    refs[:depth] : (KH*KW*G, A + i*G)      per-block weights, rows tap-major (t*G+g)
    refs[depth]  : (A + depth*G, M) f32    output: rows [0,Cin)=input, [A+iG, A+(i+1)G)=conv_i
    refs[depth+1]: (A + (depth-1)*G, M)    activated (BN+LeakyReLU) conv-input buffer (scratch)

    A = Cin rounded up to a sublane multiple of 8; pad rows are zero and their weight
    columns are zero, so every per-block store lands on an aligned full sublane tile.
    Incrementality is exact because old channels never change and all blocks share
    gamma=1 / beta=0 (default BatchNorm2d init) and the same LeakyReLU.
    """
    w_refs = refs[:depth]
    o_ref = refs[depth]
    act_ref = refs[depth + 1]

    M = o_ref.shape[1]
    inv_m = 1.0 / float(M)
    masks = m_ref[...]                                   # (KH*KW, M) f32

    # ---- input channels: raw copy to output, BN + LeakyReLU once into act_ref ----
    x = x_ref[...]
    o_ref[0:Cin, :] = x
    act_ref[0:Cin, :] = _bn_act(x, inv_m).astype(act_ref.dtype)
    if A > Cin:                                          # zero only the alignment pad rows
        o_ref[Cin:A, :] = jnp.zeros((A - Cin, M), o_ref.dtype)
        act_ref[Cin:A, :] = jnp.zeros((A - Cin, M), act_ref.dtype)

    # ---- depth blocks, statically unrolled ----
    for i in range(depth):
        c_i = A + i * G                                  # padded conv-input channel count

        # ONE MXU matmul per block: (KH*KW*G, c_i) @ (c_i, M) -> (KH*KW*G, M), f32 acc.
        z = lax.dot_general(w_refs[i][...], act_ref[0:c_i, :],
                            (((1,), (0,)), ((), ())),
                            preferred_element_type=jnp.float32)

        # Combine taps: lane-shift each (G, M) slab to its output position and mask the
        # image borders (== Conv2d zero padding). No padded scratch, no im2col concat.
        conv = None
        for kh in range(KH):
            for kw in range(KW):
                t = kh * KW + kw
                dh, dw = kh - pad, kw - pad
                slab = z[t * G:(t + 1) * G, :]
                if dh == 0 and dw == 0:
                    contrib = slab                       # center tap: always valid
                else:
                    contrib = _lane_shift(slab, dh * W + dw, M) * masks[t:t + 1, :]
                conv = contrib if conv is None else conv + contrib

        # Dense connectivity: raw conv output -> its aligned G-row slice of the output.
        o_ref[c_i:c_i + G, :] = conv

        # Incrementality: only the NEW G channels need BN + LeakyReLU (older channels'
        # activated values are unchanged and already in act_ref). Last block skipped.
        if i + 1 < depth:
            act_ref[c_i:c_i + G, :] = _bn_act(conv, inv_m).astype(act_ref.dtype)


def _conv_border_masks(N, H, W, KH, KW, pad):
    """Static (KH*KW, N*H*W) f32 masks: 1 where the tap's source pixel is inside the image."""
    m = N * H * W
    idx = np.arange(m)
    hh = (idx // W) % H
    ww = idx % W
    masks = np.zeros((KH * KW, m), np.float32)
    for kh in range(KH):
        for kw in range(KW):
            dh, dw = kh - pad, kw - pad
            valid = (hh + dh >= 0) & (hh + dh < H) & (ww + dw >= 0) & (ww + dw < W)
            masks[kh * KW + kw] = valid.astype(np.float32)
    return jnp.asarray(masks)


class DenseBlock2dPallas:
    """JAX/Pallas port of torchgan's DenseBlock2d (block=BasicBlock2d, batchnorm=True)."""

    def __init__(self, depth, in_channels, growth_rate, kernel=3, stride=1, padding=1,
                 matmul_dtype=jnp.float32, key=None):
        assert stride == 1, "spatial dims must be preserved for dense concatenation"
        assert padding == (kernel - 1) // 2
        if key is None:
            key = jax.random.PRNGKey(42)
        self.depth = depth
        self.in_channels = in_channels
        self.growth_rate = growth_rate
        self.kernel = kernel
        self.pad = padding
        self.matmul_dtype = matmul_dtype          # bf16 on v6e/v7x ~2x MXU; f32 default
        self.out_channels = in_channels + depth * growth_rate
        self.cin_pad = ((in_channels + 7) // 8) * 8   # sublane-align the input channel rows

        # True per-block weights (k*k, c_i, G), deterministic Conv2d-like uniform init
        # (used directly by the pure-JAX reference).
        self.weights = []
        c = in_channels
        for i in range(depth):
            k = jax.random.fold_in(key, i)
            fan_in = c * kernel * kernel
            bound = 1.0 / (fan_in ** 0.5)
            self.weights.append(jax.random.uniform(
                k, (kernel * kernel, c, growth_rate), jnp.float32, -bound, bound))
            c += growth_rate

        # Kernel weights: per block, (k*k*G, A + i*G); rows tap-major (t*G+g), columns are
        # padded channel indices (input channels occupy [0,Cin), pad columns [Cin,A) are 0,
        # grown channels follow). True per-block contraction size — no padding to final C.
        A, G = self.cin_pad, growth_rate
        self.w_kernel = []
        for i, w in enumerate(self.weights):
            c_true = in_channels + i * G
            c_pad = A + i * G
            wk = jnp.zeros((kernel * kernel, c_pad, G), jnp.float32)
            wk = wk.at[:, :in_channels, :].set(w[:, :in_channels, :])
            if c_true > in_channels:
                wk = wk.at[:, A:A + (c_true - in_channels), :].set(w[:, in_channels:, :])
            wk = jnp.transpose(wk, (0, 2, 1)).reshape(kernel * kernel * G, c_pad)
            self.w_kernel.append(wk.astype(matmul_dtype))

    def __call__(self, x_nchw):
        N, Cin, H, W = x_nchw.shape
        assert Cin == self.in_channels
        M = N * H * W
        A, G, depth = self.cin_pad, self.growth_rate, self.depth
        Cp = A + depth * G

        # NCHW -> channel-major (C, N*H*W): spatial/batch on the 128-lane axis, channels
        # on sublanes (lane-dense everywhere inside the kernel).
        x_cm = jnp.transpose(x_nchw, (1, 0, 2, 3)).reshape(Cin, M)
        masks = _conv_border_masks(N, H, W, self.kernel, self.kernel, self.pad)

        kernel_fn = functools.partial(
            _dense_block_kernel, H=H, W=W, Cin=Cin, A=A, G=G, depth=depth,
            KH=self.kernel, KW=self.kernel, pad=self.pad)

        # Single gridless call: whole problem (~0.3 MiB) is VMEM resident on one TensorCore.
        out_pad = pl.pallas_call(
            kernel_fn,
            out_shape=jax.ShapeDtypeStruct((Cp, M), jnp.float32),
            in_specs=[pl.BlockSpec(memory_space=pltpu.MemorySpace.VMEM)] * (2 + depth),
            out_specs=pl.BlockSpec(memory_space=pltpu.MemorySpace.VMEM),
            scratch_shapes=[pltpu.VMEM((A + (depth - 1) * G, M), self.matmul_dtype)],
        )(x_cm, masks, *self.w_kernel)

        # Drop the Cin alignment pad rows, back to NCHW.
        out_cm = out_pad if A == Cin else jnp.concatenate([out_pad[:Cin], out_pad[A:]], axis=0)
        return jnp.transpose(out_cm.reshape(self.out_channels, N, H, W), (1, 0, 2, 3))


def _reference(x_nchw, weights, pad):
    """Pure-JAX reference matching PyTorch semantics (for the correctness check)."""
    x = x_nchw
    for w in weights:
        khw, cin, g = w.shape
        k = int(round(khw ** 0.5))
        mean = jnp.mean(x, axis=(0, 2, 3), keepdims=True)
        var = jnp.mean((x - mean) ** 2, axis=(0, 2, 3), keepdims=True)
        y = (x - mean) * lax.rsqrt(var + BN_EPS)
        y = jnp.where(y >= 0, y, LEAKY_SLOPE * y)
        w_oihw = jnp.transpose(w.reshape(k, k, cin, g), (3, 2, 0, 1))
        conv = lax.conv_general_dilated(
            y, w_oihw, (1, 1), [(pad, pad), (pad, pad)],
            dimension_numbers=("NCHW", "OIHW", "NCHW"),
            precision=lax.Precision.HIGHEST)
        x = jnp.concatenate([x, conv], axis=1)
    return x


if __name__ == "__main__":
    # module config: depth=3, in_channels=4, growth_rate=8, kernel=3, stride=1, padding=1
    depth, in_channels, growth_rate = 3, 4, 8
    N, H, W = 2, 16, 16

    x = jax.random.normal(jax.random.PRNGKey(0), (N, in_channels, H, W), jnp.float32)

    model = DenseBlock2dPallas(depth, in_channels, growth_rate,
                               kernel=3, stride=1, padding=1,
                               matmul_dtype=jnp.float32,   # set jnp.bfloat16 on v6e/v7x
                               key=jax.random.PRNGKey(42))

    out = jax.block_until_ready(model(x))
    assert out.shape == (N, in_channels + depth * growth_rate, H, W), out.shape

    ref = jax.block_until_ready(_reference(x, model.weights, pad=1))
    max_err = float(jnp.max(jnp.abs(out - ref)))
    assert max_err < 1e-3, f"max abs err {max_err}"

    print("KERNEL_OK")
</pallas_src>

<mosaic_0001>
module attributes {stable_mosaic.version = 11 : i64} {
  func.func @_dense_block_kernel(%arg0: memref<4x512xf32, #tpu.memory_space<vmem>>, %arg1: memref<9x512xf32, #tpu.memory_space<vmem>>, %arg2: memref<72x8xf32, #tpu.memory_space<vmem>>, %arg3: memref<72x16xf32, #tpu.memory_space<vmem>>, %arg4: memref<72x24xf32, #tpu.memory_space<vmem>>, %arg5: memref<32x512xf32, #tpu.memory_space<vmem>>, %arg6: memref<24x512xf32, #tpu.memory_space<vmem>>) attributes {dimension_semantics = [], scalar_prefetch = 0 : i64, scratch_operands = 1 : i64, tpu.core_type = #tpu.core_type<tc>} {
    %c0 = arith.constant 0 : index
    %c0_0 = arith.constant 0 : index
    %0 = vector.load %arg1[%c0, %c0_0] : memref<9x512xf32, #tpu.memory_space<vmem>>, vector<9x512xf32>
    %c0_1 = arith.constant 0 : index
    %c0_2 = arith.constant 0 : index
    %1 = vector.load %arg0[%c0_1, %c0_2] : memref<4x512xf32, #tpu.memory_space<vmem>>, vector<4x512xf32>
    %c0_3 = arith.constant 0 : index
    %c0_4 = arith.constant 0 : index
    %2 = vector.load %arg5[%c0_3, %c0_4] : memref<32x512xf32, #tpu.memory_space<vmem>>, vector<4x512xf32>
    tpu.vector_store %arg5[%c0_3, %c0_4], %1 {strides = array<i32>} : memref<32x512xf32, #tpu.memory_space<vmem>>, vector<4x512xf32>,
    %cst = arith.constant dense<0.000000e+00> : vector<4xf32>
    %3 = vector.multi_reduction <add>, %1, %cst [1] : vector<4x512xf32> to vector<4xf32>
    %4 = vector.shape_cast %3 : vector<4xf32> to vector<4x1xf32>
    %cst_5 = arith.constant 0.001953125 : f32
    %5 = vector.broadcast %cst_5 : f32 to vector<4x1xf32>
    %6 = arith.mulf %4, %5 : vector<4x1xf32>
    %7 = vector.broadcast %6 : vector<4x1xf32> to vector<4x512xf32>
    %8 = arith.subf %1, %7 : vector<4x512xf32>
    %9 = arith.mulf %8, %8 : vector<4x512xf32>
    %cst_6 = arith.constant dense<0.000000e+00> : vector<4xf32>
    %10 = vector.multi_reduction <add>, %9, %cst_6 [1] : vector<4x512xf32> to vector<4xf32>
    %11 = vector.shape_cast %10 : vector<4xf32> to vector<4x1xf32>
    %cst_7 = arith.constant 0.001953125 : f32
    %12 = vector.broadcast %cst_7 : f32 to vector<4x1xf32>
    %13 = arith.mulf %11, %12 : vector<4x1xf32>
    %cst_8 = arith.constant 9.99999974E-6 : f32
    %14 = vector.broadcast %cst_8 : f32 to vector<4x1xf32>
    %15 = arith.addf %13, %14 : vector<4x1xf32>
    %16 = math.rsqrt %15 : vector<4x1xf32>
    %17 = vector.broadcast %16 : vector<4x1xf32> to vector<4x512xf32>
    %18 = arith.mulf %8, %17 : vector<4x512xf32>
    %cst_9 = arith.constant 0.000000e+00 : f32
    %19 = vector.broadcast %cst_9 : f32 to vector<4x512xf32>
    %20 = arith.cmpf oge, %18, %19 : vector<4x512xf32>
    %cst_10 = arith.constant 2.000000e-01 : f32
    %21 = vector.broadcast %cst_10 : f32 to vector<4x512xf32>
    %22 = arith.mulf %21, %18 : vector<4x512xf32>
    %23 = arith.select %20, %18, %22 : vector<4x512xi1>, vector<4x512xf32>
    %c0_11 = arith.constant 0 : index
    %c0_12 = arith.constant 0 : index
    %24 = vector.load %arg6[%c0_11, %c0_12] : memref<24x512xf32, #tpu.memory_space<vmem>>, vector<4x512xf32>
    tpu.vector_store %arg6[%c0_11, %c0_12], %23 {strides = array<i32>} : memref<24x512xf32, #tpu.memory_space<vmem>>, vector<4x512xf32>,
    %cst_13 = arith.constant 0.000000e+00 : f32
    %25 = vector.broadcast %cst_13 : f32 to vector<4x512xf32>
    %c4 = arith.constant 4 : index
    %c0_14 = arith.constant 0 : index
    %26 = vector.load %arg5[%c4, %c0_14] : memref<32x512xf32, #tpu.memory_space<vmem>>, vector<4x512xf32>
    tpu.vector_store %arg5[%c4, %c0_14], %25 {strides = array<i32>} : memref<32x512xf32, #tpu.memory_space<vmem>>, vector<4x512xf32>,
    %cst_15 = arith.constant 0.000000e+00 : f32
    %27 = vector.broadcast %cst_15 : f32 to vector<4x512xf32>
    %c4_16 = arith.constant 4 : index
    %c0_17 = arith.constant 0 : index
    %28 = vector.load %arg6[%c4_16, %c0_17] : memref<24x512xf32, #tpu.memory_space<vmem>>, vector<4x512xf32>
    tpu.vector_store %arg6[%c4_16, %c0_17], %27 {strides = array<i32>} : memref<24x512xf32, #tpu.memory_space<vmem>>, vector<4x512xf32>,
    %c0_18 = arith.constant 0 : index
    %c0_19 = arith.constant 0 : index
    %29 = vector.load %arg2[%c0_18, %c0_19] : memref<72x8xf32, #tpu.memory_space<vmem>>, vector<72x8xf32>
    %c0_20 = arith.constant 0 : index
    %c0_21 = arith.constant 0 : index
    %30 = vector.load %arg6[%c0_20, %c0_21] : memref<24x512xf32, #tpu.memory_space<vmem>>, vector<8x512xf32>
    %cst_22 = arith.constant dense<0.000000e+00> : vector<72x512xf32>
    %31 = tpu.matmul %29, %30, %cst_22 {dimension_numbers = #tpu.dot_dimension_numbers<[1], [0], [0], [1], [0, 0, 1, 1], [], []>} : vector<72x8xf32>, vector<8x512xf32>, vector<72x512xf32> -> vector<72x512xf32>
    %32 = vector.extract_strided_slice %31 {offsets = [0, 0], sizes = [8, 512], strides = [1, 1]} : vector<72x512xf32> to vector<8x512xf32>
    %33 = vector.extract_strided_slice %32 {offsets = [0, 495], sizes = [8, 17], strides = [1, 1]} : vector<8x512xf32> to vector<8x17xf32>
    %34 = vector.extract_strided_slice %32 {offsets = [0, 0], sizes = [8, 495], strides = [1, 1]} : vector<8x512xf32> to vector<8x495xf32>
    %35 = tpu.concatenate %33, %34 in 1 : vector<8x17xf32>, vector<8x495xf32> -> vector<8x512xf32>
    %36 = vector.extract_strided_slice %0 {offsets = [0, 0], sizes = [1, 512], strides = [1, 1]} : vector<9x512xf32> to vector<1x512xf32>
    %37 = vector.broadcast %36 : vector<1x512xf32> to vector<8x512xf32>
    %38 = arith.mulf %35, %37 : vector<8x512xf32>
    %39 = vector.extract_strided_slice %31 {offsets = [8, 0], sizes = [8, 512], strides = [1, 1]} : vector<72x512xf32> to vector<8x512xf32>
    %40 = vector.extract_strided_slice %39 {offsets = [0, 496], sizes = [8, 16], strides = [1, 1]} : vector<8x512xf32> to vector<8x16xf32>
    %41 = vector.extract_strided_slice %39 {offsets = [0, 0], sizes = [8, 496], strides = [1, 1]} : vector<8x512xf32> to vector<8x496xf32>
    %42 = tpu.concatenate %40, %41 in 1 : vector<8x16xf32>, vector<8x496xf32> -> vector<8x512xf32>
    %43 = vector.extract_strided_slice %0 {offsets = [1, 0], sizes = [1, 512], strides = [1, 1]} : vector<9x512xf32> to vector<1x512xf32>
    %44 = vector.broadcast %43 : vector<1x512xf32> to vector<8x512xf32>
    %45 = arith.mulf %42, %44 : vector<8x512xf32>
    %46 = arith.addf %38, %45 : vector<8x512xf32>
    %47 = vector.extract_strided_slice %31 {offsets = [16, 0], sizes = [8, 512], strides = [1, 1]} : vector<72x512xf32> to vector<8x512xf32>
    %48 = vector.extract_strided_slice %47 {offsets = [0, 497], sizes = [8, 15], strides = [1, 1]} : vector<8x512xf32> to vector<8x15xf32>
    %49 = vector.extract_strided_slice %47 {offsets = [0, 0], sizes = [8, 497], strides = [1, 1]} : vector<8x512xf32> to vector<8x497xf32>
    %50 = tpu.concatenate %48, %49 in 1 : vector<8x15xf32>, vector<8x497xf32> -> vector<8x512xf32>
    %51 = vector.extract_strided_slice %0 {offsets = [2, 0], sizes = [1, 512], strides = [1, 1]} : vector<9x512xf32> to vector<1x512xf32>
    %52 = vector.broadcast %51 : vector<1x512xf32> to vector<8x512xf32>
    %53 = arith.mulf %50, %52 : vector<8x512xf32>
    %54 = arith.addf %46, %53 : vector<8x512xf32>
    %55 = vector.extract_strided_slice %31 {offsets = [24, 0], sizes = [8, 512], strides = [1, 1]} : vector<72x512xf32> to vector<8x512xf32>
    %56 = vector.extract_strided_slice %55 {offsets = [0, 511], sizes = [8, 1], strides = [1, 1]} : vector<8x512xf32> to vector<8x1xf32>
    %57 = vector.extract_strided_slice %55 {offsets = [0, 0], sizes = [8, 511], strides = [1, 1]} : vector<8x512xf32> to vector<8x511xf32>
    %58 = tpu.concatenate %56, %57 in 1 : vector<8x1xf32>, vector<8x511xf32> -> vector<8x512xf32>
    %59 = vector.extract_strided_slice %0 {offsets = [3, 0], sizes = [1, 512], strides = [1, 1]} : vector<9x512xf32> to vector<1x512xf32>
    %60 = vector.broadcast %59 : vector<1x512xf32> to vector<8x512xf32>
    %61 = arith.mulf %58, %60 : vector<8x512xf32>
    %62 = arith.addf %54, %61 : vector<8x512xf32>
    %63 = vector.extract_strided_slice %31 {offsets = [32, 0], sizes = [8, 512], strides = [1, 1]} : vector<72x512xf32> to vector<8x512xf32>
    %64 = arith.addf %62, %63 : vector<8x512xf32>
    %65 = vector.extract_strided_slice %31 {offsets = [40, 0], sizes = [8, 512], strides = [1, 1]} : vector<72x512xf32> to vector<8x512xf32>
    %66 = vector.extract_strided_slice %65 {offsets = [0, 1], sizes = [8, 511], strides = [1, 1]} : vector<8x512xf32> to vector<8x511xf32>
    %67 = vector.extract_strided_slice %65 {offsets = [0, 0], sizes = [8, 1], strides = [1, 1]} : vector<8x512xf32> to vector<8x1xf32>
    %68 = tpu.concatenate %66, %67 in 1 : vector<8x511xf32>, vector<8x1xf32> -> vector<8x512xf32>
    %69 = vector.extract_strided_slice %0 {offsets = [5, 0], sizes = [1, 512], strides = [1, 1]} : vector<9x512xf32> to vector<1x512xf32>
    %70 = vector.broadcast %69 : vector<1x512xf32> to vector<8x512xf32>
    %71 = arith.mulf %68, %70 : vector<8x512xf32>
    %72 = arith.addf %64, %71 : vector<8x512xf32>
    %73 = vector.extract_strided_slice %31 {offsets = [48, 0], sizes = [8, 512], strides = [1, 1]} : vector<72x512xf32> to vector<8x512xf32>
    %74 = vector.extract_strided_slice %73 {offsets = [0, 15], sizes = [8, 497], strides = [1, 1]} : vector<8x512xf32> to vector<8x497xf32>
    %75 = vector.extract_strided_slice %73 {offsets = [0, 0], sizes = [8, 15], strides = [1, 1]} : vector<8x512xf32> to vector<8x15xf32>
    %76 = tpu.concatenate %74, %75 in 1 : vector<8x497xf32>, vector<8x15xf32> -> vector<8x512xf32>
    %77 = vector.extract_strided_slice %0 {offsets = [6, 0], sizes = [1, 512], strides = [1, 1]} : vector<9x512xf32> to vector<1x512xf32>
    %78 = vector.broadcast %77 : vector<1x512xf32> to vector<8x512xf32>
    %79 = arith.mulf %76, %78 : vector<8x512xf32>
    %80 = arith.addf %72, %79 : vector<8x512xf32>
    %81 = vector.extract_strided_slice %31 {offsets = [56, 0], sizes = [8, 512], strides = [1, 1]} : vector<72x512xf32> to vector<8x512xf32>
    %82 = vector.extract_strided_slice %81 {offsets = [0, 16], sizes = [8, 496], strides = [1, 1]} : vector<8x512xf32> to vector<8x496xf32>
    %83 = vector.extract_strided_slice %81 {offsets = [0, 0], sizes = [8, 16], strides = [1, 1]} : vector<8x512xf32> to vector<8x16xf32>
    %84 = tpu.concatenate %82, %83 in 1 : vector<8x496xf32>, vector<8x16xf32> -> vector<8x512xf32>
    %85 = vector.extract_strided_slice %0 {offsets = [7, 0], sizes = [1, 512], strides = [1, 1]} : vector<9x512xf32> to vector<1x512xf32>
    %86 = vector.broadcast %85 : vector<1x512xf32> to vector<8x512xf32>
    %87 = arith.mulf %84, %86 : vector<8x512xf32>
    %88 = arith.addf %80, %87 : vector<8x512xf32>
    %89 = vector.extract_strided_slice %31 {offsets = [64, 0], sizes = [8, 512], strides = [1, 1]} : vector<72x512xf32> to vector<8x512xf32>
    %90 = vector.extract_strided_slice %89 {offsets = [0, 17], sizes = [8, 495], strides = [1, 1]} : vector<8x512xf32> to vector<8x495xf32>
    %91 = vector.extract_strided_slice %89 {offsets = [0, 0], sizes = [8, 17], strides = [1, 1]} : vector<8x512xf32> to vector<8x17xf32>
    %92 = tpu.concatenate %90, %91 in 1 : vector<8x495xf32>, vector<8x17xf32> -> vector<8x512xf32>
    %93 = vector.extract_strided_slice %0 {offsets = [8, 0], sizes = [1, 512], strides = [1, 1]} : vector<9x512xf32> to vector<1x512xf32>
    %94 = vector.broadcast %93 : vector<1x512xf32> to vector<8x512xf32>
    %95 = arith.mulf %92, %94 : vector<8x512xf32>
    %96 = arith.addf %88, %95 : vector<8x512xf32>
    %c8 = arith.constant 8 : index
    %c0_23 = arith.constant 0 : index
    %97 = vector.load %arg5[%c8, %c0_23] : memref<32x512xf32, #tpu.memory_space<vmem>>, vector<8x512xf32>
    tpu.vector_store %arg5[%c8, %c0_23], %96 {strides = array<i32>} : memref<32x512xf32, #tpu.memory_space<vmem>>, vector<8x512xf32>,
    %cst_24 = arith.constant dense<0.000000e+00> : vector<8xf32>
    %98 = vector.multi_reduction <add>, %96, %cst_24 [1] : vector<8x512xf32> to vector<8xf32>
    %99 = vector.shape_cast %98 : vector<8xf32> to vector<8x1xf32>
    %cst_25 = arith.constant 0.001953125 : f32
    %100 = vector.broadcast %cst_25 : f32 to vector<8x1xf32>
    %101 = arith.mulf %99, %100 : vector<8x1xf32>
    %102 = vector.broadcast %101 : vector<8x1xf32> to vector<8x512xf32>
    %103 = arith.subf %96, %102 : vector<8x512xf32>
    %104 = arith.mulf %103, %103 : vector<8x512xf32>
    %cst_26 = arith.constant dense<0.000000e+00> : vector<8xf32>
    %105 = vector.multi_reduction <add>, %104, %cst_26 [1] : vector<8x512xf32> to vector<8xf32>
    %106 = vector.shape_cast %105 : vector<8xf32> to vector<8x1xf32>
    %cst_27 = arith.constant 0.001953125 : f32
    %107 = vector.broadcast %cst_27 : f32 to vector<8x1xf32>
    %108 = arith.mulf %106, %107 : vector<8x1xf32>
    %cst_28 = arith.constant 9.99999974E-6 : f32
    %109 = vector.broadcast %cst_28 : f32 to vector<8x1xf32>
    %110 = arith.addf %108, %109 : vector<8x1xf32>
    %111 = math.rsqrt %110 : vector<8x1xf32>
    %112 = vector.broadcast %111 : vector<8x1xf32> to vector<8x512xf32>
    %113 = arith.mulf %103, %112 : vector<8x512xf32>
    %cst_29 = arith.constant 0.000000e+00 : f32
    %114 = vector.broadcast %cst_29 : f32 to vector<8x512xf32>
    %115 = arith.cmpf oge, %113, %114 : vector<8x512xf32>
    %cst_30 = arith.constant 2.000000e-01 : f32
    %116 = vector.broadcast %cst_30 : f32 to vector<8x512xf32>
    %117 = arith.mulf %116, %113 : vector<8x512xf32>
    %118 = arith.select %115, %113, %117 : vector<8x512xi1>, vector<8x512xf32>
    %c8_31 = arith.constant 8 : index
    %c0_32 = arith.constant 0 : index
    %119 = vector.load %arg6[%c8_31, %c0_32] : memref<24x512xf32, #tpu.memory_space<vmem>>, vector<8x512xf32>
    tpu.vector_store %arg6[%c8_31, %c0_32], %118 {strides = array<i32>} : memref<24x512xf32, #tpu.memory_space<vmem>>, vector<8x512xf32>,
    %c0_33 = arith.constant 0 : index
    %c0_34 = arith.constant 0 : index
    %120 = vector.load %arg3[%c0_33, %c0_34] : memref<72x16xf32, #tpu.memory_space<vmem>>, vector<72x16xf32>
    %c0_35 = arith.constant 0 : index
    %c0_36 = arith.constant 0 : index
    %121 = vector.load %arg6[%c0_35, %c0_36] : memref<24x512xf32, #tpu.memory_space<vmem>>, vector<16x512xf32>
    %cst_37 = arith.constant dense<0.000000e+00> : vector<72x512xf32>
    %122 = tpu.matmul %120, %121, %cst_37 {dimension_numbers = #tpu.dot_dimension_numbers<[1], [0], [0], [1], [0, 0, 1, 1], [], []>} : vector<72x16xf32>, vector<16x512xf32>, vector<72x512xf32> -> vector<72x512xf32>
    %123 = vector.extract_strided_slice %122 {offsets = [0, 0], sizes = [8, 512], strides = [1, 1]} : vector<72x512xf32> to vector<8x512xf32>
    %124 = vector.extract_strided_slice %123 {offsets = [0, 495], sizes = [8, 17], strides = [1, 1]} : vector<8x512xf32> to vector<8x17xf32>
    %125 = vector.extract_strided_slice %123 {offsets = [0, 0], sizes = [8, 495], strides = [1, 1]} : vector<8x512xf32> to vector<8x495xf32>
    %126 = tpu.concatenate %124, %125 in 1 : vector<8x17xf32>, vector<8x495xf32> -> vector<8x512xf32>
    %127 = vector.extract_strided_slice %0 {offsets = [0, 0], sizes = [1, 512], strides = [1, 1]} : vector<9x512xf32> to vector<1x512xf32>
    %128 = vector.broadcast %127 : vector<1x512xf32> to vector<8x512xf32>
    %129 = arith.mulf %126, %128 : vector<8x512xf32>
    %130 = vector.extract_strided_slice %122 {offsets = [8, 0], sizes = [8, 512], strides = [1, 1]} : vector<72x512xf32> to vector<8x512xf32>
    %131 = vector.extract_strided_slice %130 {offsets = [0, 496], sizes = [8, 16], strides = [1, 1]} : vector<8x512xf32> to vector<8x16xf32>
    %132 = vector.extract_strided_slice %130 {offsets = [0, 0], sizes = [8, 496], strides = [1, 1]} : vector<8x512xf32> to vector<8x496xf32>
    %133 = tpu.concatenate %131, %132 in 1 : vector<8x16xf32>, vector<8x496xf32> -> vector<8x512xf32>
    %134 = vector.extract_strided_slice %0 {offsets = [1, 0], sizes = [1, 512], strides = [1, 1]} : vector<9x512xf32> to vector<1x512xf32>
    %135 = vector.broadcast %134 : vector<1x512xf32> to vector<8x512xf32>
    %136 = arith.mulf %133, %135 : vector<8x512xf32>
    %137 = arith.addf %129, %136 : vector<8x512xf32>
    %138 = vector.extract_strided_slice %122 {offsets = [16, 0], sizes = [8, 512], strides = [1, 1]} : vector<72x512xf32> to vector<8x512xf32>
    %139 = vector.extract_strided_slice %138 {offsets = [0, 497], sizes = [8, 15], strides = [1, 1]} : vector<8x512xf32> to vector<8x15xf32>
    %140 = vector.extract_strided_slice %138 {offsets = [0, 0], sizes = [8, 497], strides = [1, 1]} : vector<8x512xf32> to vector<8x497xf32>
    %141 = tpu.concatenate %139, %140 in 1 : vector<8x15xf32>, vector<8x497xf32> -> vector<8x512xf32>
    %142 = vector.extract_strided_slice %0 {offsets = [2, 0], sizes = [1, 512], strides = [1, 1]} : vector<9x512xf32> to vector<1x512xf32>
    %143 = vector.broadcast %142 : vector<1x512xf32> to vector<8x512xf32>
    %144 = arith.mulf %141, %143 : vector<8x512xf32>
    %145 = arith.addf %137, %144 : vector<8x512xf32>
    %146 = vector.extract_strided_slice %122 {offsets = [24, 0], sizes = [8, 512], strides = [1, 1]} : vector<72x512xf32> to vector<8x512xf32>
    %147 = vector.extract_strided_slice %146 {offsets = [0, 511], sizes = [8, 1], strides = [1, 1]} : vector<8x512xf32> to vector<8x1xf32>
    %148 = vector.extract_strided_slice %146 {offsets = [0, 0], sizes = [8, 511], strides = [1, 1]} : vector<8x512xf32> to vector<8x511xf32>
    %149 = tpu.concatenate %147, %148 in 1 : vector<8x1xf32>, vector<8x511xf32> -> vector<8x512xf32>
    %150 = vector.extract_strided_slice %0 {offsets = [3, 0], sizes = [1, 512], strides = [1, 1]} : vector<9x512xf32> to vector<1x512xf32>
    %151 = vector.broadcast %150 : vector<1x512xf32> to vector<8x512xf32>
    %152 = arith.mulf %149, %151 : vector<8x512xf32>
    %153 = arith.addf %145, %152 : vector<8x512xf32>
    %154 = vector.extract_strided_slice %122 {offsets = [32, 0], sizes = [8, 512], strides = [1, 1]} : vector<72x512xf32> to vector<8x512xf32>
    %155 = arith.addf %153, %154 : vector<8x512xf32>
    %156 = vector.extract_strided_slice %122 {offsets = [40, 0], sizes = [8, 512], strides = [1, 1]} : vector<72x512xf32> to vector<8x512xf32>
    %157 = vector.extract_strided_slice %156 {offsets = [0, 1], sizes = [8, 511], strides = [1, 1]} : vector<8x512xf32> to vector<8x511xf32>
    %158 = vector.extract_strided_slice %156 {offsets = [0, 0], sizes = [8, 1], strides = [1, 1]} : vector<8x512xf32> to vector<8x1xf32>
    %159 = tpu.concatenate %157, %158 in 1 : vector<8x511xf32>, vector<8x1xf32> -> vector<8x512xf32>
    %160 = vector.extract_strided_slice %0 {offsets = [5, 0], sizes = [1, 512], strides = [1, 1]} : vector<9x512xf32> to vector<1x512xf32>
    %161 = vector.broadcast %160 : vector<1x512xf32> to vector<8x512xf32>
    %162 = arith.mulf %159, %161 : vector<8x512xf32>
    %163 = arith.addf %155, %162 : vector<8x512xf32>
    %164 = vector.extract_strided_slice %122 {offsets = [48, 0], sizes = [8, 512], strides = [1, 1]} : vector<72x512xf32> to vector<8x512xf32>
    %165 = vector.extract_strided_slice %164 {offsets = [0, 15], sizes = [8, 497], strides = [1, 1]} : vector<8x512xf32> to vector<8x497xf32>
    %166 = vector.extract_strided_slice %164 {offsets = [0, 0], sizes = [8, 15], strides = [1, 1]} : vector<8x512xf32> to vector<8x15xf32>
    %167 = tpu.concatenate %165, %166 in 1 : vector<8x497xf32>, vector<8x15xf32> -> vector<8x512xf32>
    %168 = vector.extract_strided_slice %0 {offsets = [6, 0], sizes = [1, 512], strides = [1, 1]} : vector<9x512xf32> to vector<1x512xf32>
    %169 = vector.broadcast %168 : vector<1x512xf32> to vector<8x512xf32>
    %170 = arith.mulf %167, %169 : vector<8x512xf32>
    %171 = arith.addf %163, %170 : vector<8x512xf32>
    %172 = vector.extract_strided_slice %122 {offsets = [56, 0], sizes = [8, 512], strides = [1, 1]} : vector<72x512xf32> to vector<8x512xf32>
    %173 = vector.extract_strided_slice %172 {offsets = [0, 16], sizes = [8, 496], strides = [1, 1]} : vector<8x512xf32> to vector<8x496xf32>
    %174 = vector.extract_strided_slice %172 {offsets = [0, 0], sizes = [8, 16], strides = [1, 1]} : vector<8x512xf32> to vector<8x16xf32>
    %175 = tpu.concatenate %173, %174 in 1 : vector<8x496xf32>, vector<8x16xf32> -> vector<8x512xf32>
    %176 = vector.extract_strided_slice %0 {offsets = [7, 0], sizes = [1, 512], strides = [1, 1]} : vector<9x512xf32> to vector<1x512xf32>
    %177 = vector.broadcast %176 : vector<1x512xf32> to vector<8x512xf32>
    %178 = arith.mulf %175, %177 : vector<8x512xf32>
    %179 = arith.addf %171, %178 : vector<8x512xf32>
    %180 = vector.extract_strided_slice %122 {offsets = [64, 0], sizes = [8, 512], strides = [1, 1]} : vector<72x512xf32> to vector<8x512xf32>
    %181 = vector.extract_strided_slice %180 {offsets = [0, 17], sizes = [8, 495], strides = [1, 1]} : vector<8x512xf32> to vector<8x495xf32>
    %182 = vector.extract_strided_slice %180 {offsets = [0, 0], sizes = [8, 17], strides = [1, 1]} : vector<8x512xf32> to vector<8x17xf32>
    %183 = tpu.concatenate %181, %182 in 1 : vector<8x495xf32>, vector<8x17xf32> -> vector<8x512xf32>
    %184 = vector.extract_strided_slice %0 {offsets = [8, 0], sizes = [1, 512], strides = [1, 1]} : vector<9x512xf32> to vector<1x512xf32>
    %185 = vector.broadcast %184 : vector<1x512xf32> to vector<8x512xf32>
    %186 = arith.mulf %183, %185 : vector<8x512xf32>
    %187 = arith.addf %179, %186 : vector<8x512xf32>
    %c16 = arith.constant 16 : index
    %c0_38 = arith.constant 0 : index
    %188 = vector.load %arg5[%c16, %c0_38] : memref<32x512xf32, #tpu.memory_space<vmem>>, vector<8x512xf32>
    tpu.vector_store %arg5[%c16, %c0_38], %187 {strides = array<i32>} : memref<32x512xf32, #tpu.memory_space<vmem>>, vector<8x512xf32>,
    %cst_39 = arith.constant dense<0.000000e+00> : vector<8xf32>
    %189 = vector.multi_reduction <add>, %187, %cst_39 [1] : vector<8x512xf32> to vector<8xf32>
    %190 = vector.shape_cast %189 : vector<8xf32> to vector<8x1xf32>
    %cst_40 = arith.constant 0.001953125 : f32
    %191 = vector.broadcast %cst_40 : f32 to vector<8x1xf32>
    %192 = arith.mulf %190, %191 : vector<8x1xf32>
    %193 = vector.broadcast %192 : vector<8x1xf32> to vector<8x512xf32>
    %194 = arith.subf %187, %193 : vector<8x512xf32>
    %195 = arith.mulf %194, %194 : vector<8x512xf32>
    %cst_41 = arith.constant dense<0.000000e+00> : vector<8xf32>
    %196 = vector.multi_reduction <add>, %195, %cst_41 [1] : vector<8x512xf32> to vector<8xf32>
    %197 = vector.shape_cast %196 : vector<8xf32> to vector<8x1xf32>
    %cst_42 = arith.constant 0.001953125 : f32
    %198 = vector.broadcast %cst_42 : f32 to vector<8x1xf32>
    %199 = arith.mulf %197, %198 : vector<8x1xf32>
    %cst_43 = arith.constant 9.99999974E-6 : f32
    %200 = vector.broadcast %cst_43 : f32 to vector<8x1xf32>
    %201 = arith.addf %199, %200 : vector<8x1xf32>
    %202 = math.rsqrt %201 : vector<8x1xf32>
    %203 = vector.broadcast %202 : vector<8x1xf32> to vector<8x512xf32>
    %204 = arith.mulf %194, %203 : vector<8x512xf32>
    %cst_44 = arith.constant 0.000000e+00 : f32
    %205 = vector.broadcast %cst_44 : f32 to vector<8x512xf32>
    %206 = arith.cmpf oge, %204, %205 : vector<8x512xf32>
    %cst_45 = arith.constant 2.000000e-01 : f32
    %207 = vector.broadcast %cst_45 : f32 to vector<8x512xf32>
    %208 = arith.mulf %207, %204 : vector<8x512xf32>
    %209 = arith.select %206, %204, %208 : vector<8x512xi1>, vector<8x512xf32>
    %c16_46 = arith.constant 16 : index
    %c0_47 = arith.constant 0 : index
    %210 = vector.load %arg6[%c16_46, %c0_47] : memref<24x512xf32, #tpu.memory_space<vmem>>, vector<8x512xf32>
    tpu.vector_store %arg6[%c16_46, %c0_47], %209 {strides = array<i32>} : memref<24x512xf32, #tpu.memory_space<vmem>>, vector<8x512xf32>,
    %c0_48 = arith.constant 0 : index
    %c0_49 = arith.constant 0 : index
    %211 = vector.load %arg4[%c0_48, %c0_49] : memref<72x24xf32, #tpu.memory_space<vmem>>, vector<72x24xf32>
    %c0_50 = arith.constant 0 : index
    %c0_51 = arith.constant 0 : index
    %212 = vector.load %arg6[%c0_50, %c0_51] : memref<24x512xf32, #tpu.memory_space<vmem>>, vector<24x512xf32>
    %cst_52 = arith.constant dense<0.000000e+00> : vector<72x512xf32>
    %213 = tpu.matmul %211, %212, %cst_52 {dimension_numbers = #tpu.dot_dimension_numbers<[1], [0], [0], [1], [0, 0, 1, 1], [], []>} : vector<72x24xf32>, vector<24x512xf32>, vector<72x512xf32> -> vector<72x512xf32>
    %214 = vector.extract_strided_slice %213 {offsets = [0, 0], sizes = [8, 512], strides = [1, 1]} : vector<72x512xf32> to vector<8x512xf32>
    %215 = vector.extract_strided_slice %214 {offsets = [0, 495], sizes = [8, 17], strides = [1, 1]} : vector<8x512xf32> to vector<8x17xf32>
    %216 = vector.extract_strided_slice %214 {offsets = [0, 0], sizes = [8, 495], strides = [1, 1]} : vector<8x512xf32> to vector<8x495xf32>
    %217 = tpu.concatenate %215, %216 in 1 : vector<8x17xf32>, vector<8x495xf32> -> vector<8x512xf32>
    %218 = vector.extract_strided_slice %0 {offsets = [0, 0], sizes = [1, 512], strides = [1, 1]} : vector<9x512xf32> to vector<1x512xf32>
    %219 = vector.broadcast %218 : vector<1x512xf32> to vector<8x512xf32>
    %220 = arith.mulf %217, %219 : vector<8x512xf32>
    %221 = vector.extract_strided_slice %213 {offsets = [8, 0], sizes = [8, 512], strides = [1, 1]} : vector<72x512xf32> to vector<8x512xf32>
    %222 = vector.extract_strided_slice %221 {offsets = [0, 496], sizes = [8, 16], strides = [1, 1]} : vector<8x512xf32> to vector<8x16xf32>
    %223 = vector.extract_strided_slice %221 {offsets = [0, 0], sizes = [8, 496], strides = [1, 1]} : vector<8x512xf32> to vector<8x496xf32>
    %224 = tpu.concatenate %222, %223 in 1 : vector<8x16xf32>, vector<8x496xf32> -> vector<8x512xf32>
    %225 = vector.extract_strided_slice %0 {offsets = [1, 0], sizes = [1, 512], strides = [1, 1]} : vector<9x512xf32> to vector<1x512xf32>
    %226 = vector.broadcast %225 : vector<1x512xf32> to vector<8x512xf32>
    %227 = arith.mulf %224, %226 : vector<8x512xf32>
    %228 = arith.addf %220, %227 : vector<8x512xf32>
    %229 = vector.extract_strided_slice %213 {offsets = [16, 0], sizes = [8, 512], strides = [1, 1]} : vector<72x512xf32> to vector<8x512xf32>
    %230 = vector.extract_strided_slice %229 {offsets = [0, 497], sizes = [8, 15], strides = [1, 1]} : vector<8x512xf32> to vector<8x15xf32>
    %231 = vector.extract_strided_slice %229 {offsets = [0, 0], sizes = [8, 497], strides = [1, 1]} : vector<8x512xf32> to vector<8x497xf32>
    %232 = tpu.concatenate %230, %231 in 1 : vector<8x15xf32>, vector<8x497xf32> -> vector<8x512xf32>
    %233 = vector.extract_strided_slice %0 {offsets = [2, 0], sizes = [1, 512], strides = [1, 1]} : vector<9x512xf32> to vector<1x512xf32>
    %234 = vector.broadcast %233 : vector<1x512xf32> to vector<8x512xf32>
    %235 = arith.mulf %232, %234 : vector<8x512xf32>
    %236 = arith.addf %228, %235 : vector<8x512xf32>
    %237 = vector.extract_strided_slice %213 {offsets = [24, 0], sizes = [8, 512], strides = [1, 1]} : vector<72x512xf32> to vector<8x512xf32>
    %238 = vector.extract_strided_slice %237 {offsets = [0, 511], sizes = [8, 1], strides = [1, 1]} : vector<8x512xf32> to vector<8x1xf32>
    %239 = vector.extract_strided_slice %237 {offsets = [0, 0], sizes = [8, 511], strides = [1, 1]} : vector<8x512xf32> to vector<8x511xf32>
    %240 = tpu.concatenate %238, %239 in 1 : vector<8x1xf32>, vector<8x511xf32> -> vector<8x512xf32>
    %241 = vector.extract_strided_slice %0 {offsets = [3, 0], sizes = [1, 512], strides = [1, 1]} : vector<9x512xf32> to vector<1x512xf32>
    %242 = vector.broadcast %241 : vector<1x512xf32> to vector<8x512xf32>
    %243 = arith.mulf %240, %242 : vector<8x512xf32>
    %244 = arith.addf %236, %243 : vector<8x512xf32>
    %245 = vector.extract_strided_slice %213 {offsets = [32, 0], sizes = [8, 512], strides = [1, 1]} : vector<72x512xf32> to vector<8x512xf32>
    %246 = arith.addf %244, %245 : vector<8x512xf32>
    %247 = vector.extract_strided_slice %213 {offsets = [40, 0], sizes = [8, 512], strides = [1, 1]} : vector<72x512xf32> to vector<8x512xf32>
    %248 = vector.extract_strided_slice %247 {offsets = [0, 1], sizes = [8, 511], strides = [1, 1]} : vector<8x512xf32> to vector<8x511xf32>
    %249 = vector.extract_strided_slice %247 {offsets = [0, 0], sizes = [8, 1], strides = [1, 1]} : vector<8x512xf32> to vector<8x1xf32>
    %250 = tpu.concatenate %248, %249 in 1 : vector<8x511xf32>, vector<8x1xf32> -> vector<8x512xf32>
    %251 = vector.extract_strided_slice %0 {offsets = [5, 0], sizes = [1, 512], strides = [1, 1]} : vector<9x512xf32> to vector<1x512xf32>
    %252 = vector.broadcast %251 : vector<1x512xf32> to vector<8x512xf32>
    %253 = arith.mulf %250, %252 : vector<8x512xf32>
    %254 = arith.addf %246, %253 : vector<8x512xf32>
    %255 = vector.extract_strided_slice %213 {offsets = [48, 0], sizes = [8, 512], strides = [1, 1]} : vector<72x512xf32> to vector<8x512xf32>
    %256 = vector.extract_strided_slice %255 {offsets = [0, 15], sizes = [8, 497], strides = [1, 1]} : vector<8x512xf32> to vector<8x497xf32>
    %257 = vector.extract_strided_slice %255 {offsets = [0, 0], sizes = [8, 15], strides = [1, 1]} : vector<8x512xf32> to vector<8x15xf32>
    %258 = tpu.concatenate %256, %257 in 1 : vector<8x497xf32>, vector<8x15xf32> -> vector<8x512xf32>
    %259 = vector.extract_strided_slice %0 {offsets = [6, 0], sizes = [1, 512], strides = [1, 1]} : vector<9x512xf32> to vector<1x512xf32>
    %260 = vector.broadcast %259 : vector<1x512xf32> to vector<8x512xf32>
    %261 = arith.mulf %258, %260 : vector<8x512xf32>
    %262 = arith.addf %254, %261 : vector<8x512xf32>
    %263 = vector.extract_strided_slice %213 {offsets = [56, 0], sizes = [8, 512], strides = [1, 1]} : vector<72x512xf32> to vector<8x512xf32>
    %264 = vector.extract_strided_slice %263 {offsets = [0, 16], sizes = [8, 496], strides = [1, 1]} : vector<8x512xf32> to vector<8x496xf32>
    %265 = vector.extract_strided_slice %263 {offsets = [0, 0], sizes = [8, 16], strides = [1, 1]} : vector<8x512xf32> to vector<8x16xf32>
    %266 = tpu.concatenate %264, %265 in 1 : vector<8x496xf32>, vector<8x16xf32> -> vector<8x512xf32>
    %267 = vector.extract_strided_slice %0 {offsets = [7, 0], sizes = [1, 512], strides = [1, 1]} : vector<9x512xf32> to vector<1x512xf32>
    %268 = vector.broadcast %267 : vector<1x512xf32> to vector<8x512xf32>
    %269 = arith.mulf %266, %268 : vector<8x512xf32>
    %270 = arith.addf %262, %269 : vector<8x512xf32>
    %271 = vector.extract_strided_slice %213 {offsets = [64, 0], sizes = [8, 512], strides = [1, 1]} : vector<72x512xf32> to vector<8x512xf32>
    %272 = vector.extract_strided_slice %271 {offsets = [0, 17], sizes = [8, 495], strides = [1, 1]} : vector<8x512xf32> to vector<8x495xf32>
    %273 = vector.extract_strided_slice %271 {offsets = [0, 0], sizes = [8, 17], strides = [1, 1]} : vector<8x512xf32> to vector<8x17xf32>
    %274 = tpu.concatenate %272, %273 in 1 : vector<8x495xf32>, vector<8x17xf32> -> vector<8x512xf32>
    %275 = vector.extract_strided_slice %0 {offsets = [8, 0], sizes = [1, 512], strides = [1, 1]} : vector<9x512xf32> to vector<1x512xf32>
    %276 = vector.broadcast %275 : vector<1x512xf32> to vector<8x512xf32>
    %277 = arith.mulf %274, %276 : vector<8x512xf32>
    %278 = arith.addf %270, %277 : vector<8x512xf32>
    %c24 = arith.constant 24 : index
    %c0_53 = arith.constant 0 : index
    %279 = vector.load %arg5[%c24, %c0_53] : memref<32x512xf32, #tpu.memory_space<vmem>>, vector<8x512xf32>
    tpu.vector_store %arg5[%c24, %c0_53], %278 {strides = array<i32>} : memref<32x512xf32, #tpu.memory_space<vmem>>, vector<8x512xf32>,
    return
  }
}

</mosaic_0001>

<llo_original>
// kernel: tpu_custom_call.1
$region0: #{tpu_custom_call.1}
  #allocation0 [shape = 'u32[]', space=smem, size = 0x4, offset = 0x4, fixed_abs, tag = 'smem constant byte address 0x4 - core index']
  #allocation1 [shape = 'u32[144,128]{1,0:T(1,128)}', space=vmem, size = 0x12000, scoped, tag = 'internal scratch']
  #allocation2 [shape = 'f32[24,512]{1,0:T(8,128)}', space=vmem, size = 0xc000, scoped, tag = 'scratch operand']
  %s0 = inlined_call_operand.vmem [shape: f32[4,512], index: 0, kind: input, shape index: {}]
  %s1 = inlined_call_operand.vmem [shape: f32[9,512], index: 1, kind: input, shape index: {}]
  %s2 = inlined_call_operand.vmem [shape: f32[72,8], index: 2, kind: input, shape index: {}]
  %s3 = inlined_call_operand.vmem [shape: f32[72,16], index: 3, kind: input, shape index: {}]
  %s4 = inlined_call_operand.vmem [shape: f32[72,24], index: 4, kind: input, shape index: {}]
  %s5 = inlined_call_operand.hbm [shape: f32[32,512], index: 5, kind: output, shape index: {}]
  %s6 = sld [smem:[#allocation0]]
  $region30: #{tpu_custom_call.1} parent=0
    _
  %s8 = ssub.s32 1, %s6
  %s9 = scalar_select 0, %s8, %s6
  $region1: #{tpu_custom_call.1} parent=0
    #allocation3 [shape = 'u8[65536]{0}', space=vmem, size = 0x10000, scoped, tag = 'output window, operand 0, single buffered']
    #allocation4 [shape = 's32[1]{0}', space=sflag, size = 0x4, scoped, tag = 'scoped memory for tpu_custom_call.1']
    %10 = vsyncpa [#allocation4], 0
    // Predicated region
    $region2: #{tpu_custom_call.1} parent=1 // pred_check
      _
    $region3: #{tpu_custom_call.1} parent=1 // pred_check_branch
      %12 = sbr.rel (0) target = $region5
    $region4: #{tpu_custom_call.1} parent=1 // pred_region
      _
    $region5: #{tpu_custom_call.1} parent=1 // pred_fallthru
      _
    // Predicated region
    $region6: #{tpu_custom_call.1} parent=1 // pred_check
      _
    $region7: #{tpu_custom_call.1} parent=1 // pred_check_branch
      %14 = sbr.rel (0) target = $region9
    $region8: #{tpu_custom_call.1} parent=1 // pred_region
      _
    $region9: #{tpu_custom_call.1} parent=1 // pred_fallthru
      _
    // Predicated region
    $region10: #{tpu_custom_call.1} parent=1 // pred_check
      _
    $region11: #{tpu_custom_call.1} parent=1 // pred_check_branch
      %16 = sbr.rel (0) target = $region13
    $region12: #{tpu_custom_call.1} parent=1 // pred_region
      _
    $region13: #{tpu_custom_call.1} parent=1 // pred_fallthru
      _
    // Predicated region
    $region14: #{tpu_custom_call.1} parent=1 // pred_check
      _
    $region15: #{tpu_custom_call.1} parent=1 // pred_check_branch
      %18 = sbr.rel (0) target = $region17
    $region16: #{tpu_custom_call.1} parent=1 // pred_region
      _
    $region17: #{tpu_custom_call.1} parent=1 // pred_fallthru
      _
    // Predicated region
    $region18: #{tpu_custom_call.1} parent=1 // pred_check
      _
    $region19: #{tpu_custom_call.1} parent=1 // pred_check_branch
      %20 = sbr.rel (0) target = $region21
    $region20: #{tpu_custom_call.1} parent=1 // pred_region
      _
    $region21: #{tpu_custom_call.1} parent=1 // pred_fallthru
      _
    %v21 = vld [vmem:[%s1] sm:$0xff]
    %v22 = vld [vmem:[%s1 + $0x8] sm:$0xff]
    %v23 = vld [vmem:[%s1 + $0x10] sm:$0xff]
    %v24 = vld [vmem:[%s1 + $0x18] sm:$0xff]
    %v25 = vld [vmem:[%s1 + $0x20] sm:$0x1]
    %v26 = vld [vmem:[%s1 + $0x28] sm:$0x1]
    %v27 = vld [vmem:[%s1 + $0x30] sm:$0x1]
    %v28 = vld [vmem:[%s1 + $0x38] sm:$0x1]
    %v29 = vld [vmem:[%s0] sm:$0xff]
    %v30 = vld [vmem:[%s0 + $0x8] sm:$0xff]
    %v33 = vcombine.high %v29, %v29
    %v34 = vcombine.high %v30, %v30
    %37 = vst [vmem:[#allocation3] sm:$0xf] %v29
    %38 = vst [vmem:[#allocation3 + $0x8] sm:$0xf] %v33
    %39 = vst [vmem:[#allocation3 + $0x10] sm:$0xf] %v30
    %40 = vst [vmem:[#allocation3 + $0x18] sm:$0xf] %v34
    %vm41 = vcmask 1043456
    %v42 = vsel %vm41, %v29, 0.0
    %v43 = vsel %vm41, %v33, 0.0
    %v44 = vadd.f32 %v42, %v43
    %v45 = vsel %vm41, %v30, 0.0
    %v46 = vadd.f32 %v44, %v45
    %v47 = vsel %vm41, %v34, 0.0
    %v48 = vadd.f32 %v46, %v47
    %49 = vadd.xlane.f32.xlu0 %v48
    %v50 = vpop.xlane.xlu0 %49
    %v51 = vmul.f32 %v50, 0.001953125
    %v54 = vunpack.c.l.s4 839922192
    %v55 = vunpack.c.0.s8 %v54
    %v56 = vlaneseq
    %v57 = vshrl.u32 %v56, 7
    %v58 = vsub.s32 %v55, %v57
    %v59 = vrot.slane %v51, %v58
    %v61 = vsub.f32 %v29, %v59
    %v62 = vsub.f32 %v30, %v59
    %v63 = vmul.f32 %v61, %v61
    %v64 = vmul.f32 %v62, %v62
    %v67 = vcombine.high %v63, %v63
    %v68 = vcombine.high %v64, %v64
    %v71 = vsel %vm41, %v63, 0.0
    %v72 = vsel %vm41, %v67, 0.0
    %v73 = vadd.f32 %v71, %v72
    %v74 = vsel %vm41, %v64, 0.0
    %v75 = vadd.f32 %v73, %v74
    %v76 = vsel %vm41, %v68, 0.0
    %v77 = vadd.f32 %v75, %v76
    %78 = vadd.xlane.f32.xlu0 %v77
    %v79 = vpop.xlane.xlu0 %78
    %v80 = vmul.f32 %v79, 0.001953125
    %v81 = vadd.f32 %v80, 1e-05
    %v82 = vrsqrt.pop %v81
    %v85 = vunpack.c.l.s4 839922192
    %v86 = vunpack.c.0.s8 %v85
    %v87 = vlaneseq
    %v88 = vshrl.u32 %v87, 7
    %v89 = vsub.s32 %v86, %v88
    %v90 = vrot.slane %v82, %v89
    %v92 = vmul.f32 %v61, %v90
    %v93 = vmul.f32 %v62, %v90
    %vm94 = vcmp.ge.f32.partialorder %v92, 0.0
    %vm95 = vcmp.ge.f32.partialorder %v93, 0.0
    %v96 = vmul.f32 %v92, 0.2
    %v97 = vmul.f32 %v93, 0.2
    %v98 = vsel %vm94, %v92, %v96
    %v99 = vsel %vm95, %v93, %v97
    %v102 = vcombine.high %v98, %v98
    %v103 = vcombine.high %v99, %v99
    %106 = vst [vmem:[#allocation2] sm:$0xf] %v98
    %107 = vst [vmem:[#allocation2 + $0x8] sm:$0xf] %v102
    %108 = vst [vmem:[#allocation2 + $0x10] sm:$0xf] %v99
    %109 = vst [vmem:[#allocation2 + $0x18] sm:$0xf] %v103
    %110 = vst [vmem:[#allocation3] sm:$0xf0] 0.0
    %111 = vst [vmem:[#allocation3 + $0x8] sm:$0xf0] 0.0
    %112 = vst [vmem:[#allocation3 + $0x10] sm:$0xf0] 0.0
    %113 = vst [vmem:[#allocation3 + $0x18] sm:$0xf0] 0.0
    %114 = vst [vmem:[#allocation2] sm:$0xf0] 0.0
    %115 = vst [vmem:[#allocation2 + $0x8] sm:$0xf0] 0.0
    %116 = vst [vmem:[#allocation2 + $0x10] sm:$0xf0] 0.0
    %117 = vst [vmem:[#allocation2 + $0x18] sm:$0xf0] 0.0
    %v118 = vld [vmem:[%s2] sm:$0xff]
    %v119 = vld [vmem:[%s2 + $0x8] sm:$0xff]
    %v120 = vld [vmem:[%s2 + $0x10] sm:$0xff]
    %v121 = vld [vmem:[%s2 + $0x18] sm:$0xff]
    %v122 = vld [vmem:[%s2 + $0x20] sm:$0xff]
    %v123 = vld [vmem:[%s2 + $0x28] sm:$0xff]
    %v124 = vld [vmem:[%s2 + $0x30] sm:$0xff]
    %v125 = vld [vmem:[%s2 + $0x38] sm:$0xff]
    %v126 = vld [vmem:[%s2 + $0x40] sm:$0xff]
    %v127 = vld [vmem:[#allocation2] sm:$0xff]
    %v128 = vld [vmem:[#allocation2 + $0x8] sm:$0xff]
    %v129 = vld [vmem:[#allocation2 + $0x10] sm:$0xff]
    %v130 = vld [vmem:[#allocation2 + $0x18] sm:$0xff]
    %vm131 = vcmask 64512
    %v133 = vsel %vm131, %v118, 0
    %v136 = vsel %vm131, %v119, 0
    %v139 = vsel %vm131, %v120, 0
    %v142 = vsel %vm131, %v121, 0
    %v145 = vsel %vm131, %v122, 0
    %v148 = vsel %vm131, %v123, 0
    %v151 = vsel %vm131, %v124, 0
    %v154 = vsel %vm131, %v125, 0
    %v157 = vsel %vm131, %v126, 0
    %159 = vmatprep.subr.mxu0 0.0
    %160 = vmatpush1.msra.mxu0 0.0
    %161 = vmatprep.subr.mxu0 0.0
    %162 = vmatpush1.msra.mxu0 0.0
    %163 = vmatprep.subr.mxu0 0.0
    %164 = vmatpush1.msra.mxu0 0.0
    %165 = vmatprep.subr.mxu0 0.0
    %166 = vmatpush1.msra.mxu0 0.0
    %167 = vmatprep.subr.mxu0 0.0
    %168 = vmatpush1.msra.mxu0 0.0
    %169 = vmatprep.subr.mxu0 0.0
    %170 = vmatpush1.msra.mxu0 0.0
    %171 = vmatprep.subr.mxu0 0.0
    %172 = vmatpush1.msra.mxu0 0.0
    %173 = vmatprep.subr.mxu0 0.0
    %174 = vmatpush1.msra.mxu0 0.0
    %175 = vmatprep.subr.mxu0 0.0
    %176 = vmatpush1.msra.mxu0 0.0
    %177 = vmatprep.subr.mxu0 0.0
    %178 = vmatpush1.msra.mxu0 0.0
    %179 = vmatprep.subr.mxu0 0.0
    %180 = vmatpush1.msra.mxu0 0.0
    %181 = vmatprep.subr.mxu0 0.0
    %182 = vmatpush1.msra.mxu0 0.0
    %183 = vmatprep.subr.mxu0 0.0
    %184 = vmatpush1.msra.mxu0 0.0
    %185 = vmatprep.subr.mxu0 0.0
    %186 = vmatpush1.msra.mxu0 0.0
    %187 = vmatprep.subr.mxu0 0.0
    %188 = vmatpush1.msra.mxu0 0.0
    %189 = vmatprep.subr.mxu0 %v128
    %190 = vmatpush1.msra.mxu0 %v127
    %191 = vmatprep.subr.mxu0 0.0
    %192 = vmatpush2.msra.mxu0 0.0
    %193 = vmatprep.subr.mxu0 0.0
    %194 = vmatpush2.msra.mxu0 0.0
    %195 = vmatprep.subr.mxu0 0.0
    %196 = vmatpush2.msra.mxu0 0.0
    %197 = vmatprep.subr.mxu0 0.0
    %198 = vmatpush2.msra.mxu0 0.0
    %199 = vmatprep.subr.mxu0 0.0
    %200 = vmatpush2.msra.mxu0 0.0
    %201 = vmatprep.subr.mxu0 0.0
    %202 = vmatpush2.msra.mxu0 0.0
    %203 = vmatprep.subr.mxu0 0.0
    %204 = vmatpush2.msra.mxu0 0.0
    %205 = vmatprep.subr.mxu0 0.0
    %206 = vmatpush2.msra.mxu0 0.0
    %207 = vmatprep.subr.mxu0 0.0
    %208 = vmatpush2.msra.mxu0 0.0
    %209 = vmatprep.subr.mxu0 0.0
    %210 = vmatpush2.msra.mxu0 0.0
    %211 = vmatprep.subr.mxu0 0.0
    %212 = vmatpush2.msra.mxu0 0.0
    %213 = vmatprep.subr.mxu0 0.0
    %214 = vmatpush2.msra.mxu0 0.0
    %215 = vmatprep.subr.mxu0 0.0
    %216 = vmatpush2.msra.mxu0 0.0
    %217 = vmatprep.subr.mxu0 0.0
    %218 = vmatpush2.msra.mxu0 0.0
    %219 = vmatprep.subr.mxu0 0.0
    %220 = vmatpush2.msra.mxu0 0.0
    %221 = vmatprep.subr.mxu0 0.0
    %222 = vmatpush2.msra.mxu0 0.0
    %223 = vmatprep.mubr.f32.mxu0 0.0
    %224 = vmatmul.mubr.f32.gmra.mxu0 %v133
    %v225 = vpop.f32.mrf.mxu0
    %v226 = vadd.f32 0.0, %v225
    %v227 = vpop.f32.mrf.mxu0
    %v228 = vadd.f32 0.0, %v227
    %229 = vmatprep.mubr.f32.mxu0 0.0
    %230 = vmatmul.mubr.f32.gmra.mxu0 %v136
    %v231 = vpop.f32.mrf.mxu0
    %v232 = vadd.f32 0.0, %v231
    %v233 = vpop.f32.mrf.mxu0
    %v234 = vadd.f32 0.0, %v233
    %235 = vmatprep.mubr.f32.mxu0 0.0
    %236 = vmatmul.mubr.f32.gmra.mxu0 %v139
    %v237 = vpop.f32.mrf.mxu0
    %v238 = vadd.f32 0.0, %v237
    %v239 = vpop.f32.mrf.mxu0
    %v240 = vadd.f32 0.0, %v239
    %241 = vmatprep.mubr.f32.mxu0 0.0
    %242 = vmatmul.mubr.f32.gmra.mxu0 %v142
    %v243 = vpop.f32.mrf.mxu0
    %v244 = vadd.f32 0.0, %v243
    %v245 = vpop.f32.mrf.mxu0
    %v246 = vadd.f32 0.0, %v245
    %247 = vmatprep.mubr.f32.mxu0 0.0
    %248 = vmatmul.mubr.f32.gmra.mxu0 %v145
    %v249 = vpop.f32.mrf.mxu0
    %v250 = vadd.f32 0.0, %v249
    %v251 = vpop.f32.mrf.mxu0
    %v252 = vadd.f32 0.0, %v251
    %253 = vmatprep.mubr.f32.mxu0 0.0
    %254 = vmatmul.mubr.f32.gmra.mxu0 %v148
    %v255 = vpop.f32.mrf.mxu0
    %v256 = vadd.f32 0.0, %v255
    %v257 = vpop.f32.mrf.mxu0
    %v258 = vadd.f32 0.0, %v257
    %259 = vmatprep.mubr.f32.mxu0 0.0
    %260 = vmatmul.mubr.f32.gmra.mxu0 %v151
    %v261 = vpop.f32.mrf.mxu0
    %v262 = vadd.f32 0.0, %v261
    %v263 = vpop.f32.mrf.mxu0
    %v264 = vadd.f32 0.0, %v263
    %265 = vmatprep.mubr.f32.mxu0 0.0
    %266 = vmatmul.mubr.f32.gmra.mxu0 %v154
    %v267 = vpop.f32.mrf.mxu0
    %v268 = vadd.f32 0.0, %v267
    %v269 = vpop.f32.mrf.mxu0
    %v270 = vadd.f32 0.0, %v269
    %271 = vmatprep.mubr.f32.mxu0 0.0
    %272 = vmatmul.mubr.f32.gmra.mxu0 %v157
    %v273 = vpop.f32.mrf.mxu0
    %v274 = vadd.f32 0.0, %v273
    %v275 = vpop.f32.mrf.mxu0
    %v276 = vadd.f32 0.0, %v275
    %277 = vdwg.mxu0
    %278 = vmatprep.subr.mxu0 0.0
    %279 = vmatpush1.msra.mxu0 0.0
    %280 = vmatprep.subr.mxu0 0.0
    %281 = vmatpush1.msra.mxu0 0.0
    %282 = vmatprep.subr.mxu0 0.0
    %283 = vmatpush1.msra.mxu0 0.0
    %284 = vmatprep.subr.mxu0 0.0
    %285 = vmatpush1.msra.mxu0 0.0
    %286 = vmatprep.subr.mxu0 0.0
    %287 = vmatpush1.msra.mxu0 0.0
    %288 = vmatprep.subr.mxu0 0.0
    %289 = vmatpush1.msra.mxu0 0.0
    %290 = vmatprep.subr.mxu0 0.0
    %291 = vmatpush1.msra.mxu0 0.0
    %292 = vmatprep.subr.mxu0 0.0
    %293 = vmatpush1.msra.mxu0 0.0
    %294 = vmatprep.subr.mxu0 0.0
    %295 = vmatpush1.msra.mxu0 0.0
    %296 = vmatprep.subr.mxu0 0.0
    %297 = vmatpush1.msra.mxu0 0.0
    %298 = vmatprep.subr.mxu0 0.0
    %299 = vmatpush1.msra.mxu0 0.0
    %300 = vmatprep.subr.mxu0 0.0
    %301 = vmatpush1.msra.mxu0 0.0
    %302 = vmatprep.subr.mxu0 0.0
    %303 = vmatpush1.msra.mxu0 0.0
    %304 = vmatprep.subr.mxu0 0.0
    %305 = vmatpush1.msra.mxu0 0.0
    %306 = vmatprep.subr.mxu0 0.0
    %307 = vmatpush1.msra.mxu0 0.0
    %308 = vmatprep.subr.mxu0 %v130
    %309 = vmatpush1.msra.mxu0 %v129
    %310 = vmatprep.subr.mxu0 0.0
    %311 = vmatpush2.msra.mxu0 0.0
    %312 = vmatprep.subr.mxu0 0.0
    %313 = vmatpush2.msra.mxu0 0.0
    %314 = vmatprep.subr.mxu0 0.0
    %315 = vmatpush2.msra.mxu0 0.0
    %316 = vmatprep.subr.mxu0 0.0
    %317 = vmatpush2.msra.mxu0 0.0
    %318 = vmatprep.subr.mxu0 0.0
    %319 = vmatpush2.msra.mxu0 0.0
    %320 = vmatprep.subr.mxu0 0.0
    %321 = vmatpush2.msra.mxu0 0.0
    %322 = vmatprep.subr.mxu0 0.0
    %323 = vmatpush2.msra.mxu0 0.0
    %324 = vmatprep.subr.mxu0 0.0
    %325 = vmatpush2.msra.mxu0 0.0
    %326 = vmatprep.subr.mxu0 0.0
    %327 = vmatpush2.msra.mxu0 0.0
    %328 = vmatprep.subr.mxu0 0.0
    %329 = vmatpush2.msra.mxu0 0.0
    %330 = vmatprep.subr.mxu0 0.0
    %331 = vmatpush2.msra.mxu0 0.0
    %332 = vmatprep.subr.mxu0 0.0
    %333 = vmatpush2.msra.mxu0 0.0
    %334 = vmatprep.subr.mxu0 0.0
    %335 = vmatpush2.msra.mxu0 0.0
    %336 = vmatprep.subr.mxu0 0.0
    %337 = vmatpush2.msra.mxu0 0.0
    %338 = vmatprep.subr.mxu0 0.0
    %339 = vmatpush2.msra.mxu0 0.0
    %340 = vmatprep.subr.mxu0 0.0
    %341 = vmatpush2.msra.mxu0 0.0
    %342 = vmatprep.mubr.f32.mxu0 0.0
    %343 = vmatmul.mubr.f32.gmra.mxu0 %v133
    %v344 = vpop.f32.mrf.mxu0
    %v345 = vadd.f32 0.0, %v344
    %v346 = vpop.f32.mrf.mxu0
    %v347 = vadd.f32 0.0, %v346
    %348 = vmatprep.mubr.f32.mxu0 0.0
    %349 = vmatmul.mubr.f32.gmra.mxu0 %v136
    %v350 = vpop.f32.mrf.mxu0
    %v351 = vadd.f32 0.0, %v350
    %v352 = vpop.f32.mrf.mxu0
    %v353 = vadd.f32 0.0, %v352
    %354 = vmatprep.mubr.f32.mxu0 0.0
    %355 = vmatmul.mubr.f32.gmra.mxu0 %v139
    %v356 = vpop.f32.mrf.mxu0
    %v357 = vadd.f32 0.0, %v356
    %v358 = vpop.f32.mrf.mxu0
    %v359 = vadd.f32 0.0, %v358
    %360 = vmatprep.mubr.f32.mxu0 0.0
    %361 = vmatmul.mubr.f32.gmra.mxu0 %v142
    %v362 = vpop.f32.mrf.mxu0
    %v363 = vadd.f32 0.0, %v362
    %v364 = vpop.f32.mrf.mxu0
    %v365 = vadd.f32 0.0, %v364
    %366 = vmatprep.mubr.f32.mxu0 0.0
    %367 = vmatmul.mubr.f32.gmra.mxu0 %v145
    %v368 = vpop.f32.mrf.mxu0
    %v369 = vadd.f32 0.0, %v368
    %v370 = vpop.f32.mrf.mxu0
    %v371 = vadd.f32 0.0, %v370
    %372 = vmatprep.mubr.f32.mxu0 0.0
    %373 = vmatmul.mubr.f32.gmra.mxu0 %v148
    %v374 = vpop.f32.mrf.mxu0
    %v375 = vadd.f32 0.0, %v374
    %v376 = vpop.f32.mrf.mxu0
    %v377 = vadd.f32 0.0, %v376
    %378 = vmatprep.mubr.f32.mxu0 0.0
    %379 = vmatmul.mubr.f32.gmra.mxu0 %v151
    %v380 = vpop.f32.mrf.mxu0
    %v381 = vadd.f32 0.0, %v380
    %v382 = vpop.f32.mrf.mxu0
    %v383 = vadd.f32 0.0, %v382
    %384 = vmatprep.mubr.f32.mxu0 0.0
    %385 = vmatmul.mubr.f32.gmra.mxu0 %v154
    %v386 = vpop.f32.mrf.mxu0
    %v387 = vadd.f32 0.0, %v386
    %v388 = vpop.f32.mrf.mxu0
    %v389 = vadd.f32 0.0, %v388
    %390 = vmatprep.mubr.f32.mxu0 0.0
    %391 = vmatmul.mubr.f32.gmra.mxu0 %v157
    %v392 = vpop.f32.mrf.mxu0
    %v393 = vadd.f32 0.0, %v392
    %v394 = vpop.f32.mrf.mxu0
    %v395 = vadd.f32 0.0, %v394
    %396 = vdwg.mxu0
    %398 = vrot.lane.b32.xlu0 %v347, 17
    %v399 = vpop.permute.xlu0 %398
    %404 = vrot.lane.b32.xlu0 %v226, 17
    %v405 = vpop.permute.xlu0 %404
    %406 = vrot.lane.b32.xlu0 %v228, 17
    %v407 = vpop.permute.xlu0 %406
    %408 = vrot.lane.b32.xlu0 %v345, 17
    %v409 = vpop.permute.xlu0 %408
    %vm410 = vcmask 138240
    %v411 = vsel %vm410, %v405, %v407
    %v412 = vsel %vm410, %v407, %v409
    %v413 = vsel %vm410, %v409, %v399
    %v418 = vsel %vm410, %v399, %v405
    %v419 = vlaneseq
    %v420 = vshrl.u32 %v419, 7
    %v421 = vsub.s32 0, %v420
    %v422 = vrot.slane %v21, %v421
    %v423 = vlaneseq
    %v424 = vshrl.u32 %v423, 7
    %v425 = vsub.s32 0, %v424
    %v426 = vrot.slane %v22, %v425
    %v427 = vlaneseq
    %v428 = vshrl.u32 %v427, 7
    %v429 = vsub.s32 0, %v428
    %v430 = vrot.slane %v23, %v429
    %v431 = vlaneseq
    %v432 = vshrl.u32 %v431, 7
    %v433 = vsub.s32 0, %v432
    %v434 = vrot.slane %v24, %v433
    %v435 = vmul.f32 %v418, %v422
    %v436 = vmul.f32 %v411, %v426
    %v437 = vmul.f32 %v412, %v430
    %v438 = vmul.f32 %v413, %v434
    %440 = vrot.lane.b32.xlu0 %v353, 16
    %v441 = vpop.permute.xlu0 %440
    %446 = vrot.lane.b32.xlu0 %v232, 16
    %v447 = vpop.permute.xlu0 %446
    %448 = vrot.lane.b32.xlu0 %v234, 16
    %v449 = vpop.permute.xlu0 %448
    %450 = vrot.lane.b32.xlu0 %v351, 16
    %v451 = vpop.permute.xlu0 %450
    %vm452 = vcmask 130048
    %v453 = vsel %vm452, %v447, %v449
    %v454 = vsel %vm452, %v449, %v451
    %v455 = vsel %vm452, %v451, %v441
    %v460 = vsel %vm452, %v441, %v447
    %v461 = vlaneseq
    %v462 = vshrl.u32 %v461, 7
    %v463 = vsub.s32 1, %v462
    %v464 = vrot.slane %v21, %v463
    %v465 = vlaneseq
    %v466 = vshrl.u32 %v465, 7
    %v467 = vsub.s32 1, %v466
    %v468 = vrot.slane %v22, %v467
    %v469 = vlaneseq
    %v470 = vshrl.u32 %v469, 7
    %v471 = vsub.s32 1, %v470
    %v472 = vrot.slane %v23, %v471
    %v473 = vlaneseq
    %v474 = vshrl.u32 %v473, 7
    %v475 = vsub.s32 1, %v474
    %v476 = vrot.slane %v24, %v475
    %v477 = vmul.f32 %v460, %v464
    %v478 = vmul.f32 %v453, %v468
    %v479 = vmul.f32 %v454, %v472
    %v480 = vmul.f32 %v455, %v476
    %v481 = vadd.f32 %v435, %v477
    %v482 = vadd.f32 %v436, %v478
    %v483 = vadd.f32 %v437, %v479
    %v484 = vadd.f32 %v438, %v480
    %486 = vrot.lane.b32.xlu0 %v359, 15
    %v487 = vpop.permute.xlu0 %486
    %492 = vrot.lane.b32.xlu0 %v238, 15
    %v493 = vpop.permute.xlu0 %492
    %494 = vrot.lane.b32.xlu0 %v240, 15
    %v495 = vpop.permute.xlu0 %494
    %496 = vrot.lane.b32.xlu0 %v357, 15
    %v497 = vpop.permute.xlu0 %496
    %vm498 = vcmask 121856
    %v499 = vsel %vm498, %v493, %v495
    %v500 = vsel %vm498, %v495, %v497
    %v501 = vsel %vm498, %v497, %v487
    %v506 = vsel %vm498, %v487, %v493
    %v507 = vlaneseq
    %v508 = vshrl.u32 %v507, 7
    %v509 = vsub.s32 2, %v508
    %v510 = vrot.slane %v21, %v509
    %v511 = vlaneseq
    %v512 = vshrl.u32 %v511, 7
    %v513 = vsub.s32 2, %v512
    %v514 = vrot.slane %v22, %v513
    %v515 = vlaneseq
    %v516 = vshrl.u32 %v515, 7
    %v517 = vsub.s32 2, %v516
    %v518 = vrot.slane %v23, %v517
    %v519 = vlaneseq
    %v520 = vshrl.u32 %v519, 7
    %v521 = vsub.s32 2, %v520
    %v522 = vrot.slane %v24, %v521
    %v523 = vmul.f32 %v506, %v510
    %v524 = vmul.f32 %v499, %v514
    %v525 = vmul.f32 %v500, %v518
    %v526 = vmul.f32 %v501, %v522
    %v527 = vadd.f32 %v481, %v523
    %v528 = vadd.f32 %v482, %v524
    %v529 = vadd.f32 %v483, %v525
    %v530 = vadd.f32 %v484, %v526
    %532 = vrot.lane.b32.xlu0 %v365, 1
    %v533 = vpop.permute.xlu0 %532
    %538 = vrot.lane.b32.xlu0 %v244, 1
    %v539 = vpop.permute.xlu0 %538
    %540 = vrot.lane.b32.xlu0 %v246, 1
    %v541 = vpop.permute.xlu0 %540
    %542 = vrot.lane.b32.xlu0 %v363, 1
    %v543 = vpop.permute.xlu0 %542
    %vm544 = vcmask 7168
    %v545 = vsel %vm544, %v539, %v541
    %v546 = vsel %vm544, %v541, %v543
    %v547 = vsel %vm544, %v543, %v533
    %v552 = vsel %vm544, %v533, %v539
    %v553 = vlaneseq
    %v554 = vshrl.u32 %v553, 7
    %v555 = vsub.s32 3, %v554
    %v556 = vrot.slane %v21, %v555
    %v557 = vlaneseq
    %v558 = vshrl.u32 %v557, 7
    %v559 = vsub.s32 3, %v558
    %v560 = vrot.slane %v22, %v559
    %v561 = vlaneseq
    %v562 = vshrl.u32 %v561, 7
    %v563 = vsub.s32 3, %v562
    %v564 = vrot.slane %v23, %v563
    %v565 = vlaneseq
    %v566 = vshrl.u32 %v565, 7
    %v567 = vsub.s32 3, %v566
    %v568 = vrot.slane %v24, %v567
    %v569 = vmul.f32 %v552, %v556
    %v570 = vmul.f32 %v545, %v560
    %v571 = vmul.f32 %v546, %v564
    %v572 = vmul.f32 %v547, %v568
    %v573 = vadd.f32 %v527, %v569
    %v574 = vadd.f32 %v528, %v570
    %v575 = vadd.f32 %v529, %v571
    %v576 = vadd.f32 %v530, %v572
    %v577 = vadd.f32 %v573, %v250
    %v578 = vadd.f32 %v574, %v252
    %v579 = vadd.f32 %v575, %v369
    %v580 = vadd.f32 %v576, %v371
    %585 = vrot.lane.b32.xlu0 %v256, 127
    %v586 = vpop.permute.xlu0 %585
    %587 = vrot.lane.b32.xlu0 %v258, 127
    %v588 = vpop.permute.xlu0 %587
    %589 = vrot.lane.b32.xlu0 %v375, 127
    %v590 = vpop.permute.xlu0 %589
    %591 = vrot.lane.b32.xlu0 %v377, 127
    %v592 = vpop.permute.xlu0 %591
    %vm593 = vcmask 1039360
    %v594 = vsel %vm593, %v586, %v588
    %v595 = vsel %vm593, %v588, %v590
    %v596 = vsel %vm593, %v590, %v592
    %v602 = vsel %vm593, %v592, %v586
    %v603 = vlaneseq
    %v604 = vshrl.u32 %v603, 7
    %v605 = vsub.s32 5, %v604
    %v606 = vrot.slane %v21, %v605
    %v607 = vlaneseq
    %v608 = vshrl.u32 %v607, 7
    %v609 = vsub.s32 5, %v608
    %v610 = vrot.slane %v22, %v609
    %v611 = vlaneseq
    %v612 = vshrl.u32 %v611, 7
    %v613 = vsub.s32 5, %v612
    %v614 = vrot.slane %v23, %v613
    %v615 = vlaneseq
    %v616 = vshrl.u32 %v615, 7
    %v617 = vsub.s32 5, %v616
    %v618 = vrot.slane %v24, %v617
    %v619 = vmul.f32 %v594, %v606
    %v620 = vmul.f32 %v595, %v610
    %v621 = vmul.f32 %v596, %v614
    %v622 = vmul.f32 %v602, %v618
    %v623 = vadd.f32 %v577, %v619
    %v624 = vadd.f32 %v578, %v620
    %v625 = vadd.f32 %v579, %v621
    %v626 = vadd.f32 %v580, %v622
    %631 = vrot.lane.b32.xlu0 %v262, 113
    %v632 = vpop.permute.xlu0 %631
    %633 = vrot.lane.b32.xlu0 %v264, 113
    %v634 = vpop.permute.xlu0 %633
    %635 = vrot.lane.b32.xlu0 %v381, 113
    %v636 = vpop.permute.xlu0 %635
    %637 = vrot.lane.b32.xlu0 %v383, 113
    %v638 = vpop.permute.xlu0 %637
    %vm639 = vcmask 924672
    %v640 = vsel %vm639, %v632, %v634
    %v641 = vsel %vm639, %v634, %v636
    %v642 = vsel %vm639, %v636, %v638
    %v648 = vsel %vm639, %v638, %v632
    %v649 = vlaneseq
    %v650 = vshrl.u32 %v649, 7
    %v651 = vsub.s32 6, %v650
    %v652 = vrot.slane %v21, %v651
    %v653 = vlaneseq
    %v654 = vshrl.u32 %v653, 7
    %v655 = vsub.s32 6, %v654
    %v656 = vrot.slane %v22, %v655
    %v657 = vlaneseq
    %v658 = vshrl.u32 %v657, 7
    %v659 = vsub.s32 6, %v658
    %v660 = vrot.slane %v23, %v659
    %v661 = vlaneseq
    %v662 = vshrl.u32 %v661, 7
    %v663 = vsub.s32 6, %v662
    %v664 = vrot.slane %v24, %v663
    %v665 = vmul.f32 %v640, %v652
    %v666 = vmul.f32 %v641, %v656
    %v667 = vmul.f32 %v642, %v660
    %v668 = vmul.f32 %v648, %v664
    %v669 = vadd.f32 %v623, %v665
    %v670 = vadd.f32 %v624, %v666
    %v671 = vadd.f32 %v625, %v667
    %v672 = vadd.f32 %v626, %v668
    %677 = vrot.lane.b32.xlu0 %v268, 112
    %v678 = vpop.permute.xlu0 %677
    %679 = vrot.lane.b32.xlu0 %v270, 112
    %v680 = vpop.permute.xlu0 %679
    %681 = vrot.lane.b32.xlu0 %v387, 112
    %v682 = vpop.permute.xlu0 %681
    %683 = vrot.lane.b32.xlu0 %v389, 112
    %v684 = vpop.permute.xlu0 %683
    %vm685 = vcmask 916480
    %v686 = vsel %vm685, %v678, %v680
    %v687 = vsel %vm685, %v680, %v682
    %v688 = vsel %vm685, %v682, %v684
    %v694 = vsel %vm685, %v684, %v678
    %v695 = vlaneseq
    %v696 = vshrl.u32 %v695, 7
    %v697 = vsub.s32 7, %v696
    %v698 = vrot.slane %v21, %v697
    %v699 = vlaneseq
    %v700 = vshrl.u32 %v699, 7
    %v701 = vsub.s32 7, %v700
    %v702 = vrot.slane %v22, %v701
    %v703 = vlaneseq
    %v704 = vshrl.u32 %v703, 7
    %v705 = vsub.s32 7, %v704
    %v706 = vrot.slane %v23, %v705
    %v707 = vlaneseq
    %v708 = vshrl.u32 %v707, 7
    %v709 = vsub.s32 7, %v708
    %v710 = vrot.slane %v24, %v709
    %v711 = vmul.f32 %v686, %v698
    %v712 = vmul.f32 %v687, %v702
    %v713 = vmul.f32 %v688, %v706
    %v714 = vmul.f32 %v694, %v710
    %v715 = vadd.f32 %v669, %v711
    %v716 = vadd.f32 %v670, %v712
    %v717 = vadd.f32 %v671, %v713
    %v718 = vadd.f32 %v672, %v714
    %723 = vrot.lane.b32.xlu0 %v274, 111
    %v724 = vpop.permute.xlu0 %723
    %725 = vrot.lane.b32.xlu0 %v276, 111
    %v726 = vpop.permute.xlu0 %725
    %727 = vrot.lane.b32.xlu0 %v393, 111
    %v728 = vpop.permute.xlu0 %727
    %729 = vrot.lane.b32.xlu0 %v395, 111
    %v730 = vpop.permute.xlu0 %729
    %vm731 = vcmask 908288
    %v732 = vsel %vm731, %v724, %v726
    %v733 = vsel %vm731, %v726, %v728
    %v734 = vsel %vm731, %v728, %v730
    %v740 = vsel %vm731, %v730, %v724
    %v741 = vlaneseq
    %v742 = vshrl.u32 %v741, 7
    %v743 = vsub.s32 0, %v742
    %v744 = vrot.slane %v25, %v743
    %v745 = vlaneseq
    %v746 = vshrl.u32 %v745, 7
    %v747 = vsub.s32 0, %v746
    %v748 = vrot.slane %v26, %v747
    %v749 = vlaneseq
    %v750 = vshrl.u32 %v749, 7
    %v751 = vsub.s32 0, %v750
    %v752 = vrot.slane %v27, %v751
    %v753 = vlaneseq
    %v754 = vshrl.u32 %v753, 7
    %v755 = vsub.s32 0, %v754
    %v756 = vrot.slane %v28, %v755
    %v757 = vmul.f32 %v732, %v744
    %v758 = vmul.f32 %v733, %v748
    %v759 = vmul.f32 %v734, %v752
    %v760 = vmul.f32 %v740, %v756
    %v761 = vadd.f32 %v715, %v757
    %v762 = vadd.f32 %v716, %v758
    %v763 = vadd.f32 %v717, %v759
    %v764 = vadd.f32 %v718, %v760
    %765 = vst [vmem:[#allocation3 + $0x20] sm:$0xff] %v761
    %766 = vst [vmem:[#allocation3 + $0x28] sm:$0xff] %v762
    %767 = vst [vmem:[#allocation3 + $0x30] sm:$0xff] %v763
    %768 = vst [vmem:[#allocation3 + $0x38] sm:$0xff] %v764
    %v769 = vadd.f32 %v761, %v762
    %v770 = vadd.f32 %v769, %v763
    %v771 = vadd.f32 %v770, %v764
    %772 = vadd.xlane.f32.xlu0 %v771
    %v773 = vpop.xlane.xlu0 %772
    %v774 = vmul.f32 %v773, 0.001953125
    %v775 = vsub.f32 %v761, %v774
    %v776 = vsub.f32 %v762, %v774
    %v777 = vsub.f32 %v763, %v774
    %v778 = vsub.f32 %v764, %v774
    %v779 = vmul.f32 %v775, %v775
    %v780 = vmul.f32 %v776, %v776
    %v781 = vmul.f32 %v777, %v777
    %v782 = vmul.f32 %v778, %v778
    %v783 = vadd.f32 %v779, %v780
    %v784 = vadd.f32 %v783, %v781
    %v785 = vadd.f32 %v784, %v782
    %786 = vadd.xlane.f32.xlu0 %v785
    %v787 = vpop.xlane.xlu0 %786
    %v788 = vmul.f32 %v787, 0.001953125
    %v789 = vadd.f32 %v788, 1e-05
    %v790 = vrsqrt.pop %v789
    %v791 = vmul.f32 %v775, %v790
    %v792 = vmul.f32 %v776, %v790
    %v793 = vmul.f32 %v777, %v790
    %v794 = vmul.f32 %v778, %v790
    %vm795 = vcmp.ge.f32.partialorder %v791, 0.0
    %vm796 = vcmp.ge.f32.partialorder %v792, 0.0
    %vm797 = vcmp.ge.f32.partialorder %v793, 0.0
    %vm798 = vcmp.ge.f32.partialorder %v794, 0.0
    %v799 = vmul.f32 %v791, 0.2
    %v800 = vmul.f32 %v792, 0.2
    %v801 = vmul.f32 %v793, 0.2
    %v802 = vmul.f32 %v794, 0.2
    %v803 = vsel %vm795, %v791, %v799
    %v804 = vsel %vm796, %v792, %v800
    %v805 = vsel %vm797, %v793, %v801
    %v806 = vsel %vm798, %v794, %v802
    %807 = vst [vmem:[#allocation2 + $0x20] sm:$0xff] %v803
    %808 = vst [vmem:[#allocation2 + $0x28] sm:$0xff] %v804
    %809 = vst [vmem:[#allocation2 + $0x30] sm:$0xff] %v805
    %810 = vst [vmem:[#allocation2 + $0x38] sm:$0xff] %v806
    %v811 = vld [vmem:[%s3] sm:$0xff]
    %v812 = vld [vmem:[%s3 + $0x8] sm:$0xff]
    %v813 = vld [vmem:[%s3 + $0x10] sm:$0xff]
    %v814 = vld [vmem:[%s3 + $0x18] sm:$0xff]
    %v815 = vld [vmem:[%s3 + $0x20] sm:$0xff]
    %v816 = vld [vmem:[%s3 + $0x28] sm:$0xff]
    %v817 = vld [vmem:[%s3 + $0x30] sm:$0xff]
    %v818 = vld [vmem:[%s3 + $0x38] sm:$0xff]
    %v819 = vld [vmem:[%s3 + $0x40] sm:$0xff]
    %v820 = vld [vmem:[#allocation2] sm:$0xff]
    %v821 = vld [vmem:[#allocation2 + $0x8] sm:$0xff]
    %v822 = vld [vmem:[#allocation2 + $0x10] sm:$0xff]
    %v823 = vld [vmem:[#allocation2 + $0x18] sm:$0xff]
    %v824 = vld [vmem:[#allocation2 + $0x20] sm:$0xff]
    %v825 = vld [vmem:[#allocation2 + $0x28] sm:$0xff]
    %v826 = vld [vmem:[#allocation2 + $0x30] sm:$0xff]
    %v827 = vld [vmem:[#allocation2 + $0x38] sm:$0xff]
    %v829 = vsel %vm452, %v811, 0
    %v832 = vsel %vm452, %v812, 0
    %v835 = vsel %vm452, %v813, 0
    %v838 = vsel %vm452, %v814, 0
    %v841 = vsel %vm452, %v815, 0
    %v844 = vsel %vm452, %v816, 0
    %v847 = vsel %vm452, %v817, 0
    %v850 = vsel %vm452, %v818, 0
    %v853 = vsel %vm452, %v819, 0
    %855 = vmatprep.subr.mxu0 0.0
    %856 = vmatpush1.msra.mxu0 0.0
    %857 = vmatprep.subr.mxu0 0.0
    %858 = vmatpush1.msra.mxu0 0.0
    %859 = vmatprep.subr.mxu0 0.0
    %860 = vmatpush1.msra.mxu0 0.0
    %861 = vmatprep.subr.mxu0 0.0
    %862 = vmatpush1.msra.mxu0 0.0
    %863 = vmatprep.subr.mxu0 0.0
    %864 = vmatpush1.msra.mxu0 0.0
    %865 = vmatprep.subr.mxu0 0.0
    %866 = vmatpush1.msra.mxu0 0.0
    %867 = vmatprep.subr.mxu0 0.0
    %868 = vmatpush1.msra.mxu0 0.0
    %869 = vmatprep.subr.mxu0 0.0
    %870 = vmatpush1.msra.mxu0 0.0
    %871 = vmatprep.subr.mxu0 0.0
    %872 = vmatpush1.msra.mxu0 0.0
    %873 = vmatprep.subr.mxu0 0.0
    %874 = vmatpush1.msra.mxu0 0.0
    %875 = vmatprep.subr.mxu0 0.0
    %876 = vmatpush1.msra.mxu0 0.0
    %877 = vmatprep.subr.mxu0 0.0
    %878 = vmatpush1.msra.mxu0 0.0
    %879 = vmatprep.subr.mxu0 0.0
    %880 = vmatpush1.msra.mxu0 0.0
    %881 = vmatprep.subr.mxu0 0.0
    %882 = vmatpush1.msra.mxu0 0.0
    %883 = vmatprep.subr.mxu0 %v825
    %884 = vmatpush1.msra.mxu0 %v824
    %885 = vmatprep.subr.mxu0 %v821
    %886 = vmatpush1.msra.mxu0 %v820
    %887 = vmatprep.subr.mxu0 0.0
    %888 = vmatpush2.msra.mxu0 0.0
    %889 = vmatprep.subr.mxu0 0.0
    %890 = vmatpush2.msra.mxu0 0.0
    %891 = vmatprep.subr.mxu0 0.0
    %892 = vmatpush2.msra.mxu0 0.0
    %893 = vmatprep.subr.mxu0 0.0
    %894 = vmatpush2.msra.mxu0 0.0
    %895 = vmatprep.subr.mxu0 0.0
    %896 = vmatpush2.msra.mxu0 0.0
    %897 = vmatprep.subr.mxu0 0.0
    %898 = vmatpush2.msra.mxu0 0.0
    %899 = vmatprep.subr.mxu0 0.0
    %900 = vmatpush2.msra.mxu0 0.0
    %901 = vmatprep.subr.mxu0 0.0
    %902 = vmatpush2.msra.mxu0 0.0
    %903 = vmatprep.subr.mxu0 0.0
    %904 = vmatpush2.msra.mxu0 0.0
    %905 = vmatprep.subr.mxu0 0.0
    %906 = vmatpush2.msra.mxu0 0.0
    %907 = vmatprep.subr.mxu0 0.0
    %908 = vmatpush2.msra.mxu0 0.0
    %909 = vmatprep.subr.mxu0 0.0
    %910 = vmatpush2.msra.mxu0 0.0
    %911 = vmatprep.subr.mxu0 0.0
    %912 = vmatpush2.msra.mxu0 0.0
    %913 = vmatprep.subr.mxu0 0.0
    %914 = vmatpush2.msra.mxu0 0.0
    %915 = vmatprep.subr.mxu0 0.0
    %916 = vmatpush2.msra.mxu0 0.0
    %917 = vmatprep.subr.mxu0 0.0
    %918 = vmatpush2.msra.mxu0 0.0
    %919 = vmatprep.mubr.f32.mxu0 0.0
    %920 = vmatmul.mubr.f32.gmra.mxu0 %v829
    %v921 = vpop.f32.mrf.mxu0
    %v922 = vadd.f32 0.0, %v921
    %v923 = vpop.f32.mrf.mxu0
    %v924 = vadd.f32 0.0, %v923
    %925 = vmatprep.mubr.f32.mxu0 0.0
    %926 = vmatmul.mubr.f32.gmra.mxu0 %v832
    %v927 = vpop.f32.mrf.mxu0
    %v928 = vadd.f32 0.0, %v927
    %v929 = vpop.f32.mrf.mxu0
    %v930 = vadd.f32 0.0, %v929
    %931 = vmatprep.mubr.f32.mxu0 0.0
    %932 = vmatmul.mubr.f32.gmra.mxu0 %v835
    %v933 = vpop.f32.mrf.mxu0
    %v934 = vadd.f32 0.0, %v933
    %v935 = vpop.f32.mrf.mxu0
    %v936 = vadd.f32 0.0, %v935
    %937 = vmatprep.mubr.f32.mxu0 0.0
    %938 = vmatmul.mubr.f32.gmra.mxu0 %v838
    %v939 = vpop.f32.mrf.mxu0
    %v940 = vadd.f32 0.0, %v939
    %v941 = vpop.f32.mrf.mxu0
    %v942 = vadd.f32 0.0, %v941
    %943 = vmatprep.mubr.f32.mxu0 0.0
    %944 = vmatmul.mubr.f32.gmra.mxu0 %v841
    %v945 = vpop.f32.mrf.mxu0
    %v946 = vadd.f32 0.0, %v945
    %v947 = vpop.f32.mrf.mxu0
    %v948 = vadd.f32 0.0, %v947
    %949 = vmatprep.mubr.f32.mxu0 0.0
    %950 = vmatmul.mubr.f32.gmra.mxu0 %v844
    %v951 = vpop.f32.mrf.mxu0
    %v952 = vadd.f32 0.0, %v951
    %v953 = vpop.f32.mrf.mxu0
    %v954 = vadd.f32 0.0, %v953
    %955 = vmatprep.mubr.f32.mxu0 0.0
    %956 = vmatmul.mubr.f32.gmra.mxu0 %v847
    %v957 = vpop.f32.mrf.mxu0
    %v958 = vadd.f32 0.0, %v957
    %v959 = vpop.f32.mrf.mxu0
    %v960 = vadd.f32 0.0, %v959
    %961 = vmatprep.mubr.f32.mxu0 0.0
    %962 = vmatmul.mubr.f32.gmra.mxu0 %v850
    %v963 = vpop.f32.mrf.mxu0
    %v964 = vadd.f32 0.0, %v963
    %v965 = vpop.f32.mrf.mxu0
    %v966 = vadd.f32 0.0, %v965
    %967 = vmatprep.mubr.f32.mxu0 0.0
    %968 = vmatmul.mubr.f32.gmra.mxu0 %v853
    %v969 = vpop.f32.mrf.mxu0
    %v970 = vadd.f32 0.0, %v969
    %v971 = vpop.f32.mrf.mxu0
    %v972 = vadd.f32 0.0, %v971
    %973 = vdwg.mxu0
    %974 = vmatprep.subr.mxu0 0.0
    %975 = vmatpush1.msra.mxu0 0.0
    %976 = vmatprep.subr.mxu0 0.0
    %977 = vmatpush1.msra.mxu0 0.0
    %978 = vmatprep.subr.mxu0 0.0
    %979 = vmatpush1.msra.mxu0 0.0
    %980 = vmatprep.subr.mxu0 0.0
    %981 = vmatpush1.msra.mxu0 0.0
    %982 = vmatprep.subr.mxu0 0.0
    %983 = vmatpush1.msra.mxu0 0.0
    %984 = vmatprep.subr.mxu0 0.0
    %985 = vmatpush1.msra.mxu0 0.0
    %986 = vmatprep.subr.mxu0 0.0
    %987 = vmatpush1.msra.mxu0 0.0
    %988 = vmatprep.subr.mxu0 0.0
    %989 = vmatpush1.msra.mxu0 0.0
    %990 = vmatprep.subr.mxu0 0.0
    %991 = vmatpush1.msra.mxu0 0.0
    %992 = vmatprep.subr.mxu0 0.0
    %993 = vmatpush1.msra.mxu0 0.0
    %994 = vmatprep.subr.mxu0 0.0
    %995 = vmatpush1.msra.mxu0 0.0
    %996 = vmatprep.subr.mxu0 0.0
    %997 = vmatpush1.msra.mxu0 0.0
    %998 = vmatprep.subr.mxu0 0.0
    %999 = vmatpush1.msra.mxu0 0.0
    %1000 = vmatprep.subr.mxu0 0.0
    %1001 = vmatpush1.msra.mxu0 0.0
    %1002 = vmatprep.subr.mxu0 %v827
    %1003 = vmatpush1.msra.mxu0 %v826
    %1004 = vmatprep.subr.mxu0 %v823
    %1005 = vmatpush1.msra.mxu0 %v822
    %1006 = vmatprep.subr.mxu0 0.0
    %1007 = vmatpush2.msra.mxu0 0.0
    %1008 = vmatprep.subr.mxu0 0.0
    %1009 = vmatpush2.msra.mxu0 0.0
    %1010 = vmatprep.subr.mxu0 0.0
    %1011 = vmatpush2.msra.mxu0 0.0
    %1012 = vmatprep.subr.mxu0 0.0
    %1013 = vmatpush2.msra.mxu0 0.0
    %1014 = vmatprep.subr.mxu0 0.0
    %1015 = vmatpush2.msra.mxu0 0.0
    %1016 = vmatprep.subr.mxu0 0.0
    %1017 = vmatpush2.msra.mxu0 0.0
    %1018 = vmatprep.subr.mxu0 0.0
    %1019 = vmatpush2.msra.mxu0 0.0
    %1020 = vmatprep.subr.mxu0 0.0
    %1021 = vmatpush2.msra.mxu0 0.0
    %1022 = vmatprep.subr.mxu0 0.0
    %1023 = vmatpush2.msra.mxu0 0.0
    %1024 = vmatprep.subr.mxu0 0.0
    %1025 = vmatpush2.msra.mxu0 0.0
    %1026 = vmatprep.subr.mxu0 0.0
    %1027 = vmatpush2.msra.mxu0 0.0
    %1028 = vmatprep.subr.mxu0 0.0
    %1029 = vmatpush2.msra.mxu0 0.0
    %1030 = vmatprep.subr.mxu0 0.0
    %1031 = vmatpush2.msra.mxu0 0.0
    %1032 = vmatprep.subr.mxu0 0.0
    %1033 = vmatpush2.msra.mxu0 0.0
    %1034 = vmatprep.subr.mxu0 0.0
    %1035 = vmatpush2.msra.mxu0 0.0
    %1036 = vmatprep.subr.mxu0 0.0
    %1037 = vmatpush2.msra.mxu0 0.0
    %1038 = vmatprep.mubr.f32.mxu0 0.0
    %1039 = vmatmul.mubr.f32.gmra.mxu0 %v829
    %v1040 = vpop.f32.mrf.mxu0
    %v1041 = vadd.f32 0.0, %v1040
    %v1042 = vpop.f32.mrf.mxu0
    %v1043 = vadd.f32 0.0, %v1042
    %1044 = vmatprep.mubr.f32.mxu0 0.0
    %1045 = vmatmul.mubr.f32.gmra.mxu0 %v832
    %v1046 = vpop.f32.mrf.mxu0
    %v1047 = vadd.f32 0.0, %v1046
    %v1048 = vpop.f32.mrf.mxu0
    %v1049 = vadd.f32 0.0, %v1048
    %1050 = vmatprep.mubr.f32.mxu0 0.0
    %1051 = vmatmul.mubr.f32.gmra.mxu0 %v835
    %v1052 = vpop.f32.mrf.mxu0
    %v1053 = vadd.f32 0.0, %v1052
    %v1054 = vpop.f32.mrf.mxu0
    %v1055 = vadd.f32 0.0, %v1054
    %1056 = vmatprep.mubr.f32.mxu0 0.0
    %1057 = vmatmul.mubr.f32.gmra.mxu0 %v838
    %v1058 = vpop.f32.mrf.mxu0
    %v1059 = vadd.f32 0.0, %v1058
    %v1060 = vpop.f32.mrf.mxu0
    %v1061 = vadd.f32 0.0, %v1060
    %1062 = vmatprep.mubr.f32.mxu0 0.0
    %1063 = vmatmul.mubr.f32.gmra.mxu0 %v841
    %v1064 = vpop.f32.mrf.mxu0
    %v1065 = vadd.f32 0.0, %v1064
    %v1066 = vpop.f32.mrf.mxu0
    %v1067 = vadd.f32 0.0, %v1066
    %1068 = vmatprep.mubr.f32.mxu0 0.0
    %1069 = vmatmul.mubr.f32.gmra.mxu0 %v844
    %v1070 = vpop.f32.mrf.mxu0
    %v1071 = vadd.f32 0.0, %v1070
    %v1072 = vpop.f32.mrf.mxu0
    %v1073 = vadd.f32 0.0, %v1072
    %1074 = vmatprep.mubr.f32.mxu0 0.0
    %1075 = vmatmul.mubr.f32.gmra.mxu0 %v847
    %v1076 = vpop.f32.mrf.mxu0
    %v1077 = vadd.f32 0.0, %v1076
    %v1078 = vpop.f32.mrf.mxu0
    %v1079 = vadd.f32 0.0, %v1078
    %1080 = vmatprep.mubr.f32.mxu0 0.0
    %1081 = vmatmul.mubr.f32.gmra.mxu0 %v850
    %v1082 = vpop.f32.mrf.mxu0
    %v1083 = vadd.f32 0.0, %v1082
    %v1084 = vpop.f32.mrf.mxu0
    %v1085 = vadd.f32 0.0, %v1084
    %1086 = vmatprep.mubr.f32.mxu0 0.0
    %1087 = vmatmul.mubr.f32.gmra.mxu0 %v853
    %v1088 = vpop.f32.mrf.mxu0
    %v1089 = vadd.f32 0.0, %v1088
    %v1090 = vpop.f32.mrf.mxu0
    %v1091 = vadd.f32 0.0, %v1090
    %1092 = vdwg.mxu0
    %1094 = vrot.lane.b32.xlu0 %v1043, 17
    %v1095 = vpop.permute.xlu0 %1094
    %1100 = vrot.lane.b32.xlu0 %v922, 17
    %v1101 = vpop.permute.xlu0 %1100
    %1102 = vrot.lane.b32.xlu0 %v924, 17
    %v1103 = vpop.permute.xlu0 %1102
    %1104 = vrot.lane.b32.xlu0 %v1041, 17
    %v1105 = vpop.permute.xlu0 %1104
    %v1106 = vsel %vm410, %v1101, %v1103
    %v1107 = vsel %vm410, %v1103, %v1105
    %v1108 = vsel %vm410, %v1105, %v1095
    %v1113 = vsel %vm410, %v1095, %v1101
    %v1114 = vmul.f32 %v1113, %v422
    %v1115 = vmul.f32 %v1106, %v426
    %v1116 = vmul.f32 %v1107, %v430
    %v1117 = vmul.f32 %v1108, %v434
    %1119 = vrot.lane.b32.xlu0 %v1049, 16
    %v1120 = vpop.permute.xlu0 %1119
    %1125 = vrot.lane.b32.xlu0 %v928, 16
    %v1126 = vpop.permute.xlu0 %1125
    %1127 = vrot.lane.b32.xlu0 %v930, 16
    %v1128 = vpop.permute.xlu0 %1127
    %1129 = vrot.lane.b32.xlu0 %v1047, 16
    %v1130 = vpop.permute.xlu0 %1129
    %v1131 = vsel %vm452, %v1126, %v1128
    %v1132 = vsel %vm452, %v1128, %v1130
    %v1133 = vsel %vm452, %v1130, %v1120
    %v1138 = vsel %vm452, %v1120, %v1126
    %v1139 = vmul.f32 %v1138, %v464
    %v1140 = vmul.f32 %v1131, %v468
    %v1141 = vmul.f32 %v1132, %v472
    %v1142 = vmul.f32 %v1133, %v476
    %v1143 = vadd.f32 %v1114, %v1139
    %v1144 = vadd.f32 %v1115, %v1140
    %v1145 = vadd.f32 %v1116, %v1141
    %v1146 = vadd.f32 %v1117, %v1142
    %1148 = vrot.lane.b32.xlu0 %v1055, 15
    %v1149 = vpop.permute.xlu0 %1148
    %1154 = vrot.lane.b32.xlu0 %v934, 15
    %v1155 = vpop.permute.xlu0 %1154
    %1156 = vrot.lane.b32.xlu0 %v936, 15
    %v1157 = vpop.permute.xlu0 %1156
    %1158 = vrot.lane.b32.xlu0 %v1053, 15
    %v1159 = vpop.permute.xlu0 %1158
    %v1160 = vsel %vm498, %v1155, %v1157
    %v1161 = vsel %vm498, %v1157, %v1159
    %v1162 = vsel %vm498, %v1159, %v1149
    %v1167 = vsel %vm498, %v1149, %v1155
    %v1168 = vmul.f32 %v1167, %v510
    %v1169 = vmul.f32 %v1160, %v514
    %v1170 = vmul.f32 %v1161, %v518
    %v1171 = vmul.f32 %v1162, %v522
    %v1172 = vadd.f32 %v1143, %v1168
    %v1173 = vadd.f32 %v1144, %v1169
    %v1174 = vadd.f32 %v1145, %v1170
    %v1175 = vadd.f32 %v1146, %v1171
    %1177 = vrot.lane.b32.xlu0 %v1061, 1
    %v1178 = vpop.permute.xlu0 %1177
    %1183 = vrot.lane.b32.xlu0 %v940, 1
    %v1184 = vpop.permute.xlu0 %1183
    %1185 = vrot.lane.b32.xlu0 %v942, 1
    %v1186 = vpop.permute.xlu0 %1185
    %1187 = vrot.lane.b32.xlu0 %v1059, 1
    %v1188 = vpop.permute.xlu0 %1187
    %v1189 = vsel %vm544, %v1184, %v1186
    %v1190 = vsel %vm544, %v1186, %v1188
    %v1191 = vsel %vm544, %v1188, %v1178
    %v1196 = vsel %vm544, %v1178, %v1184
    %v1197 = vmul.f32 %v1196, %v556
    %v1198 = vmul.f32 %v1189, %v560
    %v1199 = vmul.f32 %v1190, %v564
    %v1200 = vmul.f32 %v1191, %v568
    %v1201 = vadd.f32 %v1172, %v1197
    %v1202 = vadd.f32 %v1173, %v1198
    %v1203 = vadd.f32 %v1174, %v1199
    %v1204 = vadd.f32 %v1175, %v1200
    %v1205 = vadd.f32 %v1201, %v946
    %v1206 = vadd.f32 %v1202, %v948
    %v1207 = vadd.f32 %v1203, %v1065
    %v1208 = vadd.f32 %v1204, %v1067
    %1213 = vrot.lane.b32.xlu0 %v952, 127
    %v1214 = vpop.permute.xlu0 %1213
    %1215 = vrot.lane.b32.xlu0 %v954, 127
    %v1216 = vpop.permute.xlu0 %1215
    %1217 = vrot.lane.b32.xlu0 %v1071, 127
    %v1218 = vpop.permute.xlu0 %1217
    %1219 = vrot.lane.b32.xlu0 %v1073, 127
    %v1220 = vpop.permute.xlu0 %1219
    %v1221 = vsel %vm593, %v1214, %v1216
    %v1222 = vsel %vm593, %v1216, %v1218
    %v1223 = vsel %vm593, %v1218, %v1220
    %v1229 = vsel %vm593, %v1220, %v1214
    %v1230 = vmul.f32 %v1221, %v606
    %v1231 = vmul.f32 %v1222, %v610
    %v1232 = vmul.f32 %v1223, %v614
    %v1233 = vmul.f32 %v1229, %v618
    %v1234 = vadd.f32 %v1205, %v1230
    %v1235 = vadd.f32 %v1206, %v1231
    %v1236 = vadd.f32 %v1207, %v1232
    %v1237 = vadd.f32 %v1208, %v1233
    %1242 = vrot.lane.b32.xlu0 %v958, 113
    %v1243 = vpop.permute.xlu0 %1242
    %1244 = vrot.lane.b32.xlu0 %v960, 113
    %v1245 = vpop.permute.xlu0 %1244
    %1246 = vrot.lane.b32.xlu0 %v1077, 113
    %v1247 = vpop.permute.xlu0 %1246
    %1248 = vrot.lane.b32.xlu0 %v1079, 113
    %v1249 = vpop.permute.xlu0 %1248
    %v1250 = vsel %vm639, %v1243, %v1245
    %v1251 = vsel %vm639, %v1245, %v1247
    %v1252 = vsel %vm639, %v1247, %v1249
    %v1258 = vsel %vm639, %v1249, %v1243
    %v1259 = vmul.f32 %v1250, %v652
    %v1260 = vmul.f32 %v1251, %v656
    %v1261 = vmul.f32 %v1252, %v660
    %v1262 = vmul.f32 %v1258, %v664
    %v1263 = vadd.f32 %v1234, %v1259
    %v1264 = vadd.f32 %v1235, %v1260
    %v1265 = vadd.f32 %v1236, %v1261
    %v1266 = vadd.f32 %v1237, %v1262
    %1271 = vrot.lane.b32.xlu0 %v964, 112
    %v1272 = vpop.permute.xlu0 %1271
    %1273 = vrot.lane.b32.xlu0 %v966, 112
    %v1274 = vpop.permute.xlu0 %1273
    %1275 = vrot.lane.b32.xlu0 %v1083, 112
    %v1276 = vpop.permute.xlu0 %1275
    %1277 = vrot.lane.b32.xlu0 %v1085, 112
    %v1278 = vpop.permute.xlu0 %1277
    %v1279 = vsel %vm685, %v1272, %v1274
    %v1280 = vsel %vm685, %v1274, %v1276
    %v1281 = vsel %vm685, %v1276, %v1278
    %v1287 = vsel %vm685, %v1278, %v1272
    %v1288 = vmul.f32 %v1279, %v698
    %v1289 = vmul.f32 %v1280, %v702
    %v1290 = vmul.f32 %v1281, %v706
    %v1291 = vmul.f32 %v1287, %v710
    %v1292 = vadd.f32 %v1263, %v1288
    %v1293 = vadd.f32 %v1264, %v1289
    %v1294 = vadd.f32 %v1265, %v1290
    %v1295 = vadd.f32 %v1266, %v1291
    %1300 = vrot.lane.b32.xlu0 %v970, 111
    %v1301 = vpop.permute.xlu0 %1300
    %1302 = vrot.lane.b32.xlu0 %v972, 111
    %v1303 = vpop.permute.xlu0 %1302
    %1304 = vrot.lane.b32.xlu0 %v1089, 111
    %v1305 = vpop.permute.xlu0 %1304
    %1306 = vrot.lane.b32.xlu0 %v1091, 111
    %v1307 = vpop.permute.xlu0 %1306
    %v1308 = vsel %vm731, %v1301, %v1303
    %v1309 = vsel %vm731, %v1303, %v1305
    %v1310 = vsel %vm731, %v1305, %v1307
    %v1316 = vsel %vm731, %v1307, %v1301
    %v1317 = vmul.f32 %v1308, %v744
    %v1318 = vmul.f32 %v1309, %v748
    %v1319 = vmul.f32 %v1310, %v752
    %v1320 = vmul.f32 %v1316, %v756
    %v1321 = vadd.f32 %v1292, %v1317
    %v1322 = vadd.f32 %v1293, %v1318
    %v1323 = vadd.f32 %v1294, %v1319
    %v1324 = vadd.f32 %v1295, %v1320
    %1325 = vst [vmem:[#allocation3 + $0x40] sm:$0xff] %v1321
    %1326 = vst [vmem:[#allocation3 + $0x48] sm:$0xff] %v1322
    %1327 = vst [vmem:[#allocation3 + $0x50] sm:$0xff] %v1323
    %1328 = vst [vmem:[#allocation3 + $0x58] sm:$0xff] %v1324
    %v1329 = vadd.f32 %v1321, %v1322
    %v1330 = vadd.f32 %v1329, %v1323
    %v1331 = vadd.f32 %v1330, %v1324
    %1332 = vadd.xlane.f32.xlu0 %v1331
    %v1333 = vpop.xlane.xlu0 %1332
    %v1334 = vmul.f32 %v1333, 0.001953125
    %v1335 = vsub.f32 %v1321, %v1334
    %v1336 = vsub.f32 %v1322, %v1334
    %v1337 = vsub.f32 %v1323, %v1334
    %v1338 = vsub.f32 %v1324, %v1334
    %v1339 = vmul.f32 %v1335, %v1335
    %v1340 = vmul.f32 %v1336, %v1336
    %v1341 = vmul.f32 %v1337, %v1337
    %v1342 = vmul.f32 %v1338, %v1338
    %v1343 = vadd.f32 %v1339, %v1340
    %v1344 = vadd.f32 %v1343, %v1341
    %v1345 = vadd.f32 %v1344, %v1342
    %1346 = vadd.xlane.f32.xlu0 %v1345
    %v1347 = vpop.xlane.xlu0 %1346
    %v1348 = vmul.f32 %v1347, 0.001953125
    %v1349 = vadd.f32 %v1348, 1e-05
    %v1350 = vrsqrt.pop %v1349
    %v1351 = vmul.f32 %v1335, %v1350
    %v1352 = vmul.f32 %v1336, %v1350
    %v1353 = vmul.f32 %v1337, %v1350
    %v1354 = vmul.f32 %v1338, %v1350
    %vm1355 = vcmp.ge.f32.partialorder %v1351, 0.0
    %vm1356 = vcmp.ge.f32.partialorder %v1352, 0.0
    %vm1357 = vcmp.ge.f32.partialorder %v1353, 0.0
    %vm1358 = vcmp.ge.f32.partialorder %v1354, 0.0
    %v1359 = vmul.f32 %v1351, 0.2
    %v1360 = vmul.f32 %v1352, 0.2
    %v1361 = vmul.f32 %v1353, 0.2
    %v1362 = vmul.f32 %v1354, 0.2
    %v1363 = vsel %vm1355, %v1351, %v1359
    %v1364 = vsel %vm1356, %v1352, %v1360
    %v1365 = vsel %vm1357, %v1353, %v1361
    %v1366 = vsel %vm1358, %v1354, %v1362
    %1367 = vst [vmem:[#allocation2 + $0x40] sm:$0xff] %v1363
    %1368 = vst [vmem:[#allocation2 + $0x48] sm:$0xff] %v1364
    %1369 = vst [vmem:[#allocation2 + $0x50] sm:$0xff] %v1365
    %1370 = vst [vmem:[#allocation2 + $0x58] sm:$0xff] %v1366
    %v1371 = vld [vmem:[%s4] sm:$0xff]
    %v1372 = vld [vmem:[%s4 + $0x8] sm:$0xff]
    %v1373 = vld [vmem:[%s4 + $0x10] sm:$0xff]
    %v1374 = vld [vmem:[%s4 + $0x18] sm:$0xff]
    %v1375 = vld [vmem:[%s4 + $0x20] sm:$0xff]
    %v1376 = vld [vmem:[%s4 + $0x28] sm:$0xff]
    %v1377 = vld [vmem:[%s4 + $0x30] sm:$0xff]
    %v1378 = vld [vmem:[%s4 + $0x38] sm:$0xff]
    %v1379 = vld [vmem:[%s4 + $0x40] sm:$0xff]
    %v1380 = vld [vmem:[#allocation2] sm:$0xff]
    %v1381 = vld [vmem:[#allocation2 + $0x8] sm:$0xff]
    %v1382 = vld [vmem:[#allocation2 + $0x10] sm:$0xff]
    %v1383 = vld [vmem:[#allocation2 + $0x18] sm:$0xff]
    %v1384 = vld [vmem:[#allocation2 + $0x20] sm:$0xff]
    %v1385 = vld [vmem:[#allocation2 + $0x28] sm:$0xff]
    %v1386 = vld [vmem:[#allocation2 + $0x30] sm:$0xff]
    %v1387 = vld [vmem:[#allocation2 + $0x38] sm:$0xff]
    %v1388 = vld [vmem:[#allocation2 + $0x40] sm:$0xff]
    %v1389 = vld [vmem:[#allocation2 + $0x48] sm:$0xff]
    %v1390 = vld [vmem:[#allocation2 + $0x50] sm:$0xff]
    %v1391 = vld [vmem:[#allocation2 + $0x58] sm:$0xff]
    %vm1392 = vcmask 195584
    %v1394 = vsel %vm1392, %v1371, 0
    %v1397 = vsel %vm1392, %v1372, 0
    %v1400 = vsel %vm1392, %v1373, 0
    %v1403 = vsel %vm1392, %v1374, 0
    %v1406 = vsel %vm1392, %v1375, 0
    %v1409 = vsel %vm1392, %v1376, 0
    %v1412 = vsel %vm1392, %v1377, 0
    %v1415 = vsel %vm1392, %v1378, 0
    %v1418 = vsel %vm1392, %v1379, 0
    %1420 = vmatprep.subr.mxu0 0.0
    %1421 = vmatpush1.msra.mxu0 0.0
    %1422 = vmatprep.subr.mxu0 0.0
    %1423 = vmatpush1.msra.mxu0 0.0
    %1424 = vmatprep.subr.mxu0 0.0
    %1425 = vmatpush1.msra.mxu0 0.0
    %1426 = vmatprep.subr.mxu0 0.0
    %1427 = vmatpush1.msra.mxu0 0.0
    %1428 = vmatprep.subr.mxu0 0.0
    %1429 = vmatpush1.msra.mxu0 0.0
    %1430 = vmatprep.subr.mxu0 0.0
    %1431 = vmatpush1.msra.mxu0 0.0
    %1432 = vmatprep.subr.mxu0 0.0
    %1433 = vmatpush1.msra.mxu0 0.0
    %1434 = vmatprep.subr.mxu0 0.0
    %1435 = vmatpush1.msra.mxu0 0.0
    %1436 = vmatprep.subr.mxu0 0.0
    %1437 = vmatpush1.msra.mxu0 0.0
    %1438 = vmatprep.subr.mxu0 0.0
    %1439 = vmatpush1.msra.mxu0 0.0
    %1440 = vmatprep.subr.mxu0 0.0
    %1441 = vmatpush1.msra.mxu0 0.0
    %1442 = vmatprep.subr.mxu0 0.0
    %1443 = vmatpush1.msra.mxu0 0.0
    %1444 = vmatprep.subr.mxu0 0.0
    %1445 = vmatpush1.msra.mxu0 0.0
    %1446 = vmatprep.subr.mxu0 %v1389
    %1447 = vmatpush1.msra.mxu0 %v1388
    %1448 = vmatprep.subr.mxu0 %v1385
    %1449 = vmatpush1.msra.mxu0 %v1384
    %1450 = vmatprep.subr.mxu0 %v1381
    %1451 = vmatpush1.msra.mxu0 %v1380
    %1452 = vmatprep.subr.mxu0 0.0
    %1453 = vmatpush2.msra.mxu0 0.0
    %1454 = vmatprep.subr.mxu0 0.0
    %1455 = vmatpush2.msra.mxu0 0.0
    %1456 = vmatprep.subr.mxu0 0.0
    %1457 = vmatpush2.msra.mxu0 0.0
    %1458 = vmatprep.subr.mxu0 0.0
    %1459 = vmatpush2.msra.mxu0 0.0
    %1460 = vmatprep.subr.mxu0 0.0
    %1461 = vmatpush2.msra.mxu0 0.0
    %1462 = vmatprep.subr.mxu0 0.0
    %1463 = vmatpush2.msra.mxu0 0.0
    %1464 = vmatprep.subr.mxu0 0.0
    %1465 = vmatpush2.msra.mxu0 0.0
    %1466 = vmatprep.subr.mxu0 0.0
    %1467 = vmatpush2.msra.mxu0 0.0
    %1468 = vmatprep.subr.mxu0 0.0
    %1469 = vmatpush2.msra.mxu0 0.0
    %1470 = vmatprep.subr.mxu0 0.0
    %1471 = vmatpush2.msra.mxu0 0.0
    %1472 = vmatprep.subr.mxu0 0.0
    %1473 = vmatpush2.msra.mxu0 0.0
    %1474 = vmatprep.subr.mxu0 0.0
    %1475 = vmatpush2.msra.mxu0 0.0
    %1476 = vmatprep.subr.mxu0 0.0
    %1477 = vmatpush2.msra.mxu0 0.0
    %1478 = vmatprep.subr.mxu0 0.0
    %1479 = vmatpush2.msra.mxu0 0.0
    %1480 = vmatprep.subr.mxu0 0.0
    %1481 = vmatpush2.msra.mxu0 0.0
    %1482 = vmatprep.subr.mxu0 0.0
    %1483 = vmatpush2.msra.mxu0 0.0
    %1484 = vmatprep.mubr.f32.mxu0 0.0
    %1485 = vmatmul.mubr.f32.gmra.mxu0 %v1394
    %v1486 = vpop.f32.mrf.mxu0
    %v1487 = vadd.f32 0.0, %v1486
    %v1488 = vpop.f32.mrf.mxu0
    %v1489 = vadd.f32 0.0, %v1488
    %1490 = vmatprep.mubr.f32.mxu0 0.0
    %1491 = vmatmul.mubr.f32.gmra.mxu0 %v1397
    %v1492 = vpop.f32.mrf.mxu0
    %v1493 = vadd.f32 0.0, %v1492
    %v1494 = vpop.f32.mrf.mxu0
    %v1495 = vadd.f32 0.0, %v1494
    %1496 = vmatprep.mubr.f32.mxu0 0.0
    %1497 = vmatmul.mubr.f32.gmra.mxu0 %v1400
    %v1498 = vpop.f32.mrf.mxu0
    %v1499 = vadd.f32 0.0, %v1498
    %v1500 = vpop.f32.mrf.mxu0
    %v1501 = vadd.f32 0.0, %v1500
    %1502 = vmatprep.mubr.f32.mxu0 0.0
    %1503 = vmatmul.mubr.f32.gmra.mxu0 %v1403
    %v1504 = vpop.f32.mrf.mxu0
    %v1505 = vadd.f32 0.0, %v1504
    %v1506 = vpop.f32.mrf.mxu0
    %v1507 = vadd.f32 0.0, %v1506
    %1508 = vmatprep.mubr.f32.mxu0 0.0
    %1509 = vmatmul.mubr.f32.gmra.mxu0 %v1406
    %v1510 = vpop.f32.mrf.mxu0
    %v1511 = vadd.f32 0.0, %v1510
    %v1512 = vpop.f32.mrf.mxu0
    %v1513 = vadd.f32 0.0, %v1512
    %1514 = vmatprep.mubr.f32.mxu0 0.0
    %1515 = vmatmul.mubr.f32.gmra.mxu0 %v1409
    %v1516 = vpop.f32.mrf.mxu0
    %v1517 = vadd.f32 0.0, %v1516
    %v1518 = vpop.f32.mrf.mxu0
    %v1519 = vadd.f32 0.0, %v1518
    %1520 = vmatprep.mubr.f32.mxu0 0.0
    %1521 = vmatmul.mubr.f32.gmra.mxu0 %v1412
    %v1522 = vpop.f32.mrf.mxu0
    %v1523 = vadd.f32 0.0, %v1522
    %v1524 = vpop.f32.mrf.mxu0
    %v1525 = vadd.f32 0.0, %v1524
    %1526 = vmatprep.mubr.f32.mxu0 0.0
    %1527 = vmatmul.mubr.f32.gmra.mxu0 %v1415
    %v1528 = vpop.f32.mrf.mxu0
    %v1529 = vadd.f32 0.0, %v1528
    %v1530 = vpop.f32.mrf.mxu0
    %v1531 = vadd.f32 0.0, %v1530
    %1532 = vmatprep.mubr.f32.mxu0 0.0
    %1533 = vmatmul.mubr.f32.gmra.mxu0 %v1418
    %v1534 = vpop.f32.mrf.mxu0
    %v1535 = vadd.f32 0.0, %v1534
    %v1536 = vpop.f32.mrf.mxu0
    %v1537 = vadd.f32 0.0, %v1536
    %1538 = vdwg.mxu0
    %1539 = vmatprep.subr.mxu0 0.0
    %1540 = vmatpush1.msra.mxu0 0.0
    %1541 = vmatprep.subr.mxu0 0.0
    %1542 = vmatpush1.msra.mxu0 0.0
    %1543 = vmatprep.subr.mxu0 0.0
    %1544 = vmatpush1.msra.mxu0 0.0
    %1545 = vmatprep.subr.mxu0 0.0
    %1546 = vmatpush1.msra.mxu0 0.0
    %1547 = vmatprep.subr.mxu0 0.0
    %1548 = vmatpush1.msra.mxu0 0.0
    %1549 = vmatprep.subr.mxu0 0.0
    %1550 = vmatpush1.msra.mxu0 0.0
    %1551 = vmatprep.subr.mxu0 0.0
    %1552 = vmatpush1.msra.mxu0 0.0
    %1553 = vmatprep.subr.mxu0 0.0
    %1554 = vmatpush1.msra.mxu0 0.0
    %1555 = vmatprep.subr.mxu0 0.0
    %1556 = vmatpush1.msra.mxu0 0.0
    %1557 = vmatprep.subr.mxu0 0.0
    %1558 = vmatpush1.msra.mxu0 0.0
    %1559 = vmatprep.subr.mxu0 0.0
    %1560 = vmatpush1.msra.mxu0 0.0
    %1561 = vmatprep.subr.mxu0 0.0
    %1562 = vmatpush1.msra.mxu0 0.0
    %1563 = vmatprep.subr.mxu0 0.0
    %1564 = vmatpush1.msra.mxu0 0.0
    %1565 = vmatprep.subr.mxu0 %v1391
    %1566 = vmatpush1.msra.mxu0 %v1390
    %1567 = vmatprep.subr.mxu0 %v1387
    %1568 = vmatpush1.msra.mxu0 %v1386
    %1569 = vmatprep.subr.mxu0 %v1383
    %1570 = vmatpush1.msra.mxu0 %v1382
    %1571 = vmatprep.subr.mxu0 0.0
    %1572 = vmatpush2.msra.mxu0 0.0
    %1573 = vmatprep.subr.mxu0 0.0
    %1574 = vmatpush2.msra.mxu0 0.0
    %1575 = vmatprep.subr.mxu0 0.0
    %1576 = vmatpush2.msra.mxu0 0.0
    %1577 = vmatprep.subr.mxu0 0.0
    %1578 = vmatpush2.msra.mxu0 0.0
    %1579 = vmatprep.subr.mxu0 0.0
    %1580 = vmatpush2.msra.mxu0 0.0
    %1581 = vmatprep.subr.mxu0 0.0
    %1582 = vmatpush2.msra.mxu0 0.0
    %1583 = vmatprep.subr.mxu0 0.0
    %1584 = vmatpush2.msra.mxu0 0.0
    %1585 = vmatprep.subr.mxu0 0.0
    %1586 = vmatpush2.msra.mxu0 0.0
    %1587 = vmatprep.subr.mxu0 0.0
    %1588 = vmatpush2.msra.mxu0 0.0
    %1589 = vmatprep.subr.mxu0 0.0
    %1590 = vmatpush2.msra.mxu0 0.0
    %1591 = vmatprep.subr.mxu0 0.0
    %1592 = vmatpush2.msra.mxu0 0.0
    %1593 = vmatprep.subr.mxu0 0.0
    %1594 = vmatpush2.msra.mxu0 0.0
    %1595 = vmatprep.subr.mxu0 0.0
    %1596 = vmatpush2.msra.mxu0 0.0
    %1597 = vmatprep.subr.mxu0 0.0
    %1598 = vmatpush2.msra.mxu0 0.0
    %1599 = vmatprep.subr.mxu0 0.0
    %1600 = vmatpush2.msra.mxu0 0.0
    %1601 = vmatprep.subr.mxu0 0.0
    %1602 = vmatpush2.msra.mxu0 0.0
    %1603 = vmatprep.mubr.f32.mxu0 0.0
    %1604 = vmatmul.mubr.f32.gmra.mxu0 %v1394
    %v1605 = vpop.f32.mrf.mxu0
    %v1606 = vadd.f32 0.0, %v1605
    %v1607 = vpop.f32.mrf.mxu0
    %v1608 = vadd.f32 0.0, %v1607
    %1609 = vmatprep.mubr.f32.mxu0 0.0
    %1610 = vmatmul.mubr.f32.gmra.mxu0 %v1397
    %v1611 = vpop.f32.mrf.mxu0
    %v1612 = vadd.f32 0.0, %v1611
    %v1613 = vpop.f32.mrf.mxu0
    %v1614 = vadd.f32 0.0, %v1613
    %1615 = vmatprep.mubr.f32.mxu0 0.0
    %1616 = vmatmul.mubr.f32.gmra.mxu0 %v1400
    %v1617 = vpop.f32.mrf.mxu0
    %v1618 = vadd.f32 0.0, %v1617
    %v1619 = vpop.f32.mrf.mxu0
    %v1620 = vadd.f32 0.0, %v1619
    %1621 = vmatprep.mubr.f32.mxu0 0.0
    %1622 = vmatmul.mubr.f32.gmra.mxu0 %v1403
    %v1623 = vpop.f32.mrf.mxu0
    %v1624 = vadd.f32 0.0, %v1623
    %v1625 = vpop.f32.mrf.mxu0
    %v1626 = vadd.f32 0.0, %v1625
    %1627 = vmatprep.mubr.f32.mxu0 0.0
    %1628 = vmatmul.mubr.f32.gmra.mxu0 %v1406
    %v1629 = vpop.f32.mrf.mxu0
    %v1630 = vadd.f32 0.0, %v1629
    %v1631 = vpop.f32.mrf.mxu0
    %v1632 = vadd.f32 0.0, %v1631
    %1633 = vmatprep.mubr.f32.mxu0 0.0
    %1634 = vmatmul.mubr.f32.gmra.mxu0 %v1409
    %v1635 = vpop.f32.mrf.mxu0
    %v1636 = vadd.f32 0.0, %v1635
    %v1637 = vpop.f32.mrf.mxu0
    %v1638 = vadd.f32 0.0, %v1637
    %1639 = vmatprep.mubr.f32.mxu0 0.0
    %1640 = vmatmul.mubr.f32.gmra.mxu0 %v1412
    %v1641 = vpop.f32.mrf.mxu0
    %v1642 = vadd.f32 0.0, %v1641
    %v1643 = vpop.f32.mrf.mxu0
    %v1644 = vadd.f32 0.0, %v1643
    %1645 = vmatprep.mubr.f32.mxu0 0.0
    %1646 = vmatmul.mubr.f32.gmra.mxu0 %v1415
    %v1647 = vpop.f32.mrf.mxu0
    %v1648 = vadd.f32 0.0, %v1647
    %v1649 = vpop.f32.mrf.mxu0
    %v1650 = vadd.f32 0.0, %v1649
    %1651 = vmatprep.mubr.f32.mxu0 0.0
    %1652 = vmatmul.mubr.f32.gmra.mxu0 %v1418
    %v1653 = vpop.f32.mrf.mxu0
    %v1654 = vadd.f32 0.0, %v1653
    %v1655 = vpop.f32.mrf.mxu0
    %v1656 = vadd.f32 0.0, %v1655
    %1657 = vdwg.mxu0
    %1659 = vrot.lane.b32.xlu0 %v1608, 17
    %v1660 = vpop.permute.xlu0 %1659
    %1665 = vrot.lane.b32.xlu0 %v1487, 17
    %v1666 = vpop.permute.xlu0 %1665
    %1667 = vrot.lane.b32.xlu0 %v1489, 17
    %v1668 = vpop.permute.xlu0 %1667
    %1669 = vrot.lane.b32.xlu0 %v1606, 17
    %v1670 = vpop.permute.xlu0 %1669
    %v1671 = vsel %vm410, %v1666, %v1668
    %v1672 = vsel %vm410, %v1668, %v1670
    %v1673 = vsel %vm410, %v1670, %v1660
    %v1678 = vsel %vm410, %v1660, %v1666
    %v1679 = vmul.f32 %v1678, %v422
    %v1680 = vmul.f32 %v1671, %v426
    %v1681 = vmul.f32 %v1672, %v430
    %v1682 = vmul.f32 %v1673, %v434
    %1684 = vrot.lane.b32.xlu0 %v1614, 16
    %v1685 = vpop.permute.xlu0 %1684
    %1690 = vrot.lane.b32.xlu0 %v1493, 16
    %v1691 = vpop.permute.xlu0 %1690
    %1692 = vrot.lane.b32.xlu0 %v1495, 16
    %v1693 = vpop.permute.xlu0 %1692
    %1694 = vrot.lane.b32.xlu0 %v1612, 16
    %v1695 = vpop.permute.xlu0 %1694
    %v1696 = vsel %vm452, %v1691, %v1693
    %v1697 = vsel %vm452, %v1693, %v1695
    %v1698 = vsel %vm452, %v1695, %v1685
    %v1703 = vsel %vm452, %v1685, %v1691
    %v1704 = vmul.f32 %v1703, %v464
    %v1705 = vmul.f32 %v1696, %v468
    %v1706 = vmul.f32 %v1697, %v472
    %v1707 = vmul.f32 %v1698, %v476
    %v1708 = vadd.f32 %v1679, %v1704
    %v1709 = vadd.f32 %v1680, %v1705
    %v1710 = vadd.f32 %v1681, %v1706
    %v1711 = vadd.f32 %v1682, %v1707
    %1713 = vrot.lane.b32.xlu0 %v1620, 15
    %v1714 = vpop.permute.xlu0 %1713
    %1719 = vrot.lane.b32.xlu0 %v1499, 15
    %v1720 = vpop.permute.xlu0 %1719
    %1721 = vrot.lane.b32.xlu0 %v1501, 15
    %v1722 = vpop.permute.xlu0 %1721
    %1723 = vrot.lane.b32.xlu0 %v1618, 15
    %v1724 = vpop.permute.xlu0 %1723
    %v1725 = vsel %vm498, %v1720, %v1722
    %v1726 = vsel %vm498, %v1722, %v1724
    %v1727 = vsel %vm498, %v1724, %v1714
    %v1732 = vsel %vm498, %v1714, %v1720
    %v1733 = vmul.f32 %v1732, %v510
    %v1734 = vmul.f32 %v1725, %v514
    %v1735 = vmul.f32 %v1726, %v518
    %v1736 = vmul.f32 %v1727, %v522
    %v1737 = vadd.f32 %v1708, %v1733
    %v1738 = vadd.f32 %v1709, %v1734
    %v1739 = vadd.f32 %v1710, %v1735
    %v1740 = vadd.f32 %v1711, %v1736
    %1742 = vrot.lane.b32.xlu0 %v1626, 1
    %v1743 = vpop.permute.xlu0 %1742
    %1748 = vrot.lane.b32.xlu0 %v1505, 1
    %v1749 = vpop.permute.xlu0 %1748
    %1750 = vrot.lane.b32.xlu0 %v1507, 1
    %v1751 = vpop.permute.xlu0 %1750
    %1752 = vrot.lane.b32.xlu0 %v1624, 1
    %v1753 = vpop.permute.xlu0 %1752
    %v1754 = vsel %vm544, %v1749, %v1751
    %v1755 = vsel %vm544, %v1751, %v1753
    %v1756 = vsel %vm544, %v1753, %v1743
    %v1761 = vsel %vm544, %v1743, %v1749
    %v1762 = vmul.f32 %v1761, %v556
    %v1763 = vmul.f32 %v1754, %v560
    %v1764 = vmul.f32 %v1755, %v564
    %v1765 = vmul.f32 %v1756, %v568
    %v1766 = vadd.f32 %v1737, %v1762
    %v1767 = vadd.f32 %v1738, %v1763
    %v1768 = vadd.f32 %v1739, %v1764
    %v1769 = vadd.f32 %v1740, %v1765
    %v1770 = vadd.f32 %v1766, %v1511
    %v1771 = vadd.f32 %v1767, %v1513
    %v1772 = vadd.f32 %v1768, %v1630
    %v1773 = vadd.f32 %v1769, %v1632
    %1778 = vrot.lane.b32.xlu0 %v1517, 127
    %v1779 = vpop.permute.xlu0 %1778
    %1780 = vrot.lane.b32.xlu0 %v1519, 127
    %v1781 = vpop.permute.xlu0 %1780
    %1782 = vrot.lane.b32.xlu0 %v1636, 127
    %v1783 = vpop.permute.xlu0 %1782
    %1784 = vrot.lane.b32.xlu0 %v1638, 127
    %v1785 = vpop.permute.xlu0 %1784
    %v1786 = vsel %vm593, %v1779, %v1781
    %v1787 = vsel %vm593, %v1781, %v1783
    %v1788 = vsel %vm593, %v1783, %v1785
    %v1794 = vsel %vm593, %v1785, %v1779
    %v1795 = vmul.f32 %v1786, %v606
    %v1796 = vmul.f32 %v1787, %v610
    %v1797 = vmul.f32 %v1788, %v614
    %v1798 = vmul.f32 %v1794, %v618
    %v1799 = vadd.f32 %v1770, %v1795
    %v1800 = vadd.f32 %v1771, %v1796
    %v1801 = vadd.f32 %v1772, %v1797
    %v1802 = vadd.f32 %v1773, %v1798
    %1807 = vrot.lane.b32.xlu0 %v1523, 113
    %v1808 = vpop.permute.xlu0 %1807
    %1809 = vrot.lane.b32.xlu0 %v1525, 113
    %v1810 = vpop.permute.xlu0 %1809
    %1811 = vrot.lane.b32.xlu0 %v1642, 113
    %v1812 = vpop.permute.xlu0 %1811
    %1813 = vrot.lane.b32.xlu0 %v1644, 113
    %v1814 = vpop.permute.xlu0 %1813
    %v1815 = vsel %vm639, %v1808, %v1810
    %v1816 = vsel %vm639, %v1810, %v1812
    %v1817 = vsel %vm639, %v1812, %v1814
    %v1823 = vsel %vm639, %v1814, %v1808
    %v1824 = vmul.f32 %v1815, %v652
    %v1825 = vmul.f32 %v1816, %v656
    %v1826 = vmul.f32 %v1817, %v660
    %v1827 = vmul.f32 %v1823, %v664
    %v1828 = vadd.f32 %v1799, %v1824
    %v1829 = vadd.f32 %v1800, %v1825
    %v1830 = vadd.f32 %v1801, %v1826
    %v1831 = vadd.f32 %v1802, %v1827
    %1836 = vrot.lane.b32.xlu0 %v1529, 112
    %v1837 = vpop.permute.xlu0 %1836
    %1838 = vrot.lane.b32.xlu0 %v1531, 112
    %v1839 = vpop.permute.xlu0 %1838
    %1840 = vrot.lane.b32.xlu0 %v1648, 112
    %v1841 = vpop.permute.xlu0 %1840
    %1842 = vrot.lane.b32.xlu0 %v1650, 112
    %v1843 = vpop.permute.xlu0 %1842
    %v1844 = vsel %vm685, %v1837, %v1839
    %v1845 = vsel %vm685, %v1839, %v1841
    %v1846 = vsel %vm685, %v1841, %v1843
    %v1852 = vsel %vm685, %v1843, %v1837
    %v1853 = vmul.f32 %v1844, %v698
    %v1854 = vmul.f32 %v1845, %v702
    %v1855 = vmul.f32 %v1846, %v706
    %v1856 = vmul.f32 %v1852, %v710
    %v1857 = vadd.f32 %v1828, %v1853
    %v1858 = vadd.f32 %v1829, %v1854
    %v1859 = vadd.f32 %v1830, %v1855
    %v1860 = vadd.f32 %v1831, %v1856
    %1865 = vrot.lane.b32.xlu0 %v1535, 111
    %v1866 = vpop.permute.xlu0 %1865
    %1867 = vrot.lane.b32.xlu0 %v1537, 111
    %v1868 = vpop.permute.xlu0 %1867
    %1869 = vrot.lane.b32.xlu0 %v1654, 111
    %v1870 = vpop.permute.xlu0 %1869
    %1871 = vrot.lane.b32.xlu0 %v1656, 111
    %v1872 = vpop.permute.xlu0 %1871
    %v1873 = vsel %vm731, %v1866, %v1868
    %v1874 = vsel %vm731, %v1868, %v1870
    %v1875 = vsel %vm731, %v1870, %v1872
    %v1881 = vsel %vm731, %v1872, %v1866
    %v1882 = vmul.f32 %v1873, %v744
    %v1883 = vmul.f32 %v1874, %v748
    %v1884 = vmul.f32 %v1875, %v752
    %v1885 = vmul.f32 %v1881, %v756
    %v1886 = vadd.f32 %v1857, %v1882
    %v1887 = vadd.f32 %v1858, %v1883
    %v1888 = vadd.f32 %v1859, %v1884
    %v1889 = vadd.f32 %v1860, %v1885
    %1890 = vst [vmem:[#allocation3 + $0x60] sm:$0xff] %v1886
    %1891 = vst [vmem:[#allocation3 + $0x68] sm:$0xff] %v1887
    %1892 = vst [vmem:[#allocation3 + $0x70] sm:$0xff] %v1888
    %1893 = vst [vmem:[#allocation3 + $0x78] sm:$0xff] %v1889
    // Predicated region
    $region22: #{tpu_custom_call.1} parent=1 // pred_check
      _
    $region23: #{tpu_custom_call.1} parent=1 // pred_check_branch
      %1895 = sbr.rel (0) target = $region25
    $region24: #{tpu_custom_call.1} parent=1 // pred_region
      %s1897 = ssub.s32 2048, 2048
      %1898 = vsyncadd [#allocation4], %s1897
      %s1899 = sshll.u32 [#allocation3], 4
      %s1900 = int_to_ptr.vmem [resolvable:$true] %s1899
      %1905 = dma.vmem_to_hbm [thread:$0]  %s1900, 2048, %s5, [#allocation4], 512, 512, 32
    $region25: #{tpu_custom_call.1} parent=1 // pred_fallthru
      _
    // Predicated region
    $region26: #{tpu_custom_call.1} parent=1 // pred_check
      _
    $region27: #{tpu_custom_call.1} parent=1 // pred_check_branch
      %1907 = sbr.rel (0) target = $region29
    $region28: #{tpu_custom_call.1} parent=1 // pred_region
      %1908 = dma.done [#allocation4], 2048
    $region29: #{tpu_custom_call.1} parent=1 // pred_fallthru
      _
    %1909 = vsyncpa [#allocation4], 1

</llo_original>
